<compile_context>
chip_gen: v7x
topology: tpu7x:2x2x1
jax: 0.10.0
libtpu: 0.0.40
codegen_flags: <defaults>
</compile_context>

<pallas_src>
import functools

import jax
import jax.numpy as jnp
import numpy as np
from jax.experimental import pallas as pl
from jax.experimental.pallas import tpu as pltpu

BN_EPS = 1e-5
LANE = 128


def _round_up(x, m):
    return ((x + m - 1) // m) * m


def _cdiv(a, b):
    return -(-a // b)


def _vmem_bytes(shape, dtype):
    """Rough VMEM footprint of a block: last dim padded to 128 lanes, second-to-
    last to 8 sublanes (conservative for packed dtypes)."""
    shape = list(shape)
    if len(shape) == 1:
        shape = [1] + shape
    shape[-1] = _round_up(shape[-1], 128)
    shape[-2] = _round_up(shape[-2], 8)
    n = 1
    for d in shape:
        n *= d
    return n * jnp.dtype(dtype).itemsize


def _choose_tile_h(H, W, cin, cout, cout_p, in_dtype, store_dtype,
                   target_rows, budget):
    """Pick TILE_H (not required to divide H) so the phase-1 working set fits."""
    tile_h = max(1, min(H, target_rows // max(W, 1)))

    def p1_bytes(th):
        hp = _cdiv(H, th) * th
        return (2 * _vmem_bytes((hp + 2, W + 2, cin), in_dtype)      # resident image (double-buffered)
                + 2 * _vmem_bytes((9 * cin, cout_p), in_dtype)       # im2col weight
                + 2 * _vmem_bytes((1, cout_p), jnp.float32)          # bias
                + 2 * _vmem_bytes((th, W, cout), store_dtype)        # y tile
                + 2 * _vmem_bytes((2, cout_p), jnp.float32)          # stats tile
                + _vmem_bytes((th * W, 9 * cin), in_dtype)           # patch temp
                + 2 * _vmem_bytes((th * W, cout_p), jnp.float32))    # acc temps

    while tile_h > 1 and p1_bytes(tile_h) > 0.9 * budget:
        tile_h = max(1, tile_h // 2)
    return tile_h, p1_bytes(tile_h)


def conv_stats_kernel(x_ref, w_ref, b_ref, y_ref, s_ref, *, true_h):
    # x_ref : (1, H_pad+2, W+2, Cin)   zero-padded NHWC image (resident across h-tiles)
    # w_ref : (9*Cin, Cout_p)          im2col conv weight (tap-major, channel-minor)
    # b_ref : (1, Cout_p)              conv bias (f32)
    # y_ref : (1, TILE_H, W, Cout)     conv+bias tile, valid channels only, bf16/f32
    # s_ref : (1, 1, 2, Cout_p)        per-tile [sum, sum_of_squares] over valid rows
    h = pl.program_id(1)
    tile_h = y_ref.shape[1]
    W = y_ref.shape[2]
    cout = y_ref.shape[3]
    cin = x_ref.shape[3]
    h_pad = x_ref.shape[1] - 2          # padded height (static)
    row0 = h * tile_h

    # im2col patch from 9 shifted slices of the resident image -> one fat-K dot
    # (K = 9*Cin) on the MXU, f32 accumulation.  No im2col buffer touches HBM.
    taps = []
    for dh in range(3):
        for dw in range(3):
            taps.append(x_ref[0, pl.ds(row0 + dh, tile_h), pl.ds(dw, W), :])
    patch = jnp.concatenate(taps, axis=-1).reshape(tile_h * W, 9 * cin)

    acc = jnp.dot(patch, w_ref[...], preferred_element_type=jnp.float32)
    acc = acc + b_ref[...]                     # conv bias (broadcast over pixels)

    # Store only the valid Cout channels, in the round-trip dtype.
    y_ref[...] = acc[:, :cout].reshape(1, tile_h, W, cout).astype(y_ref.dtype)

    # BN partial statistics from the f32 accumulator (before the downcast).
    # Rows beyond the true image height (padded tail tile) are masked out.
    if h_pad != true_h:                        # static: only emitted when padded
        limit = (true_h - row0) * W
        pix = jax.lax.broadcasted_iota(jnp.int32, acc.shape, 0)
        acc = jnp.where(pix < limit, acc, 0.0)
    # TODO(synk): E[x^2]-E[x]^2 in f32 can lose precision when |mean| >> std;
    # a centered/two-pass reduction would be needed for very tight tolerances.
    s_ref[0, 0, 0:1, :] = jnp.sum(acc, axis=0, keepdims=True)
    s_ref[0, 0, 1:2, :] = jnp.sum(acc * acc, axis=0, keepdims=True)


def bn_relu_kernel(y_ref, scale_ref, shift_ref, o_ref):
    # Folded BN affine + ReLU, in place over the conv intermediate (aliased):
    #   y = max(conv * scale + shift, 0)   per channel, f32 math.
    cout = scale_ref.shape[-1]
    y = y_ref[...].astype(jnp.float32)
    scale = scale_ref[...].reshape(1, 1, 1, cout)
    shift = shift_ref[...].reshape(1, 1, 1, cout)
    o_ref[...] = jnp.maximum(y * scale + shift, 0.0).astype(o_ref.dtype)


@functools.partial(
    jax.jit,
    static_argnames=("compute_dtype", "target_rows", "vmem_budget_bytes",
                     "out_format"))
def conv_batch_norm(x_nchw, w_oihw, bias, gamma, beta, *,
                    compute_dtype=jnp.bfloat16, target_rows=2048,
                    vmem_budget_bytes=40 * 1024 * 1024, out_format="NCHW"):
    """ConvBatchNorm forward. x_nchw: (N, Cin, H, W) f32 -> (N, Cout, H, W) f32.

    compute_dtype applies to the MXU operands and the conv HBM round-trip; all
    accumulation, BN statistics, normalization and ReLU are done in f32.
    """
    N, Cin, H, W = x_nchw.shape
    Cout = w_oihw.shape[0]
    Cout_p = _round_up(Cout, LANE)              # lane-dense MXU N dim
    store_dtype = jnp.float32 if compute_dtype == jnp.float32 else jnp.bfloat16

    TILE_H, p1_work = _choose_tile_h(H, W, Cin, Cout, Cout_p, compute_dtype,
                                     store_dtype, target_rows, vmem_budget_bytes)
    num_hb = _cdiv(H, TILE_H)
    H_pad = num_hb * TILE_H
    grid = (N, num_hb)
    vmem_limit = int(min(max(vmem_budget_bytes, int(1.25 * p1_work)),
                         128 * 1024 * 1024))

    # --- glue: NCHW -> NHWC, zero-pad halo + tail rows, cast MXU operands ---
    # TODO(synk): for large inputs the transpose/pad/cast could be folded into
    # phase 1 (masked halo handling) to avoid this extra HBM pass.
    x_nhwc = jnp.transpose(x_nchw, (0, 2, 3, 1))
    xp = jnp.pad(x_nhwc, ((0, 0), (1, 1 + (H_pad - H)), (1, 1), (0, 0)))
    xp = xp.astype(compute_dtype)

    # weight (Cout, Cin, 3, 3) -> (kh, kw, Cin, Cout) -> (9*Cin, Cout_p), tap-major
    w9 = jnp.transpose(w_oihw, (2, 3, 1, 0)).reshape(9 * Cin, Cout)
    w9 = jnp.pad(w9, ((0, 0), (0, Cout_p - Cout))).astype(compute_dtype)
    b2d = jnp.pad(bias.astype(jnp.float32), (0, Cout_p - Cout)).reshape(1, Cout_p)

    in_item = jnp.dtype(compute_dtype).itemsize
    st_item = jnp.dtype(store_dtype).itemsize
    flops_p1 = 2 * N * H_pad * W * 9 * Cin * Cout_p
    bytes_p1 = (N * (H_pad + 2) * (W + 2) * Cin * in_item
                + 9 * Cin * Cout_p * in_item + 4 * Cout_p
                + N * H_pad * W * Cout * st_item
                + N * num_hb * 2 * Cout_p * 4)

    # ---------------- Phase 1: conv + per-tile BN partial statistics ----------
    kernel1 = functools.partial(conv_stats_kernel, true_h=H)
    conv_out, stats = pl.pallas_call(
        kernel1,
        out_shape=(jax.ShapeDtypeStruct((N, H_pad, W, Cout), store_dtype),
                   jax.ShapeDtypeStruct((N, num_hb, 2, Cout_p), jnp.float32)),
        grid_spec=pltpu.PrefetchScalarGridSpec(
            num_scalar_prefetch=0,
            grid=grid,
            in_specs=[
                # full padded image per n; same block for every h-tile -> resident.
                # TODO(synk): for huge images on v7x/v5e, single-buffer this spec
                # (pl.Buffered(1)) or switch to a halo-row-tiled manual DMA.
                pl.BlockSpec((1, H_pad + 2, W + 2, Cin), lambda n, h: (n, 0, 0, 0)),
                pl.BlockSpec((9 * Cin, Cout_p), lambda n, h: (0, 0)),
                pl.BlockSpec((1, Cout_p), lambda n, h: (0, 0)),
            ],
            out_specs=(
                pl.BlockSpec((1, TILE_H, W, Cout), lambda n, h: (n, h, 0, 0)),
                pl.BlockSpec((1, 1, 2, Cout_p), lambda n, h: (n, h, 0, 0)),
            ),
        ),
        compiler_params=pltpu.CompilerParams(
            dimension_semantics=("parallel", "parallel"),
            vmem_limit_bytes=vmem_limit),
        cost_estimate=pl.CostEstimate(flops=flops_p1, transcendentals=0,
                                      bytes_accessed=bytes_p1),
    )(xp, w9, b2d)

    # ------ tiny glue: reduce stats, fold BN affine into scale/shift (f32) ----
    m_total = jnp.float32(N * H * W)            # only valid (unmasked) pixels
    ch_sum = jnp.sum(stats[:, :, 0, :], axis=(0, 1))
    ch_sq = jnp.sum(stats[:, :, 1, :], axis=(0, 1))
    mean = ch_sum / m_total
    var = jnp.maximum(ch_sq / m_total - mean * mean, 0.0)
    inv = jax.lax.rsqrt(var + BN_EPS)
    g = gamma.astype(jnp.float32)
    bt = beta.astype(jnp.float32)
    scale = (g * inv[:Cout]).reshape(1, Cout)
    shift = (bt - mean[:Cout] * g * inv[:Cout]).reshape(1, Cout)

    # ---------------- Phase 2: normalize (folded FMA) + ReLU, in place --------
    out_p = pl.pallas_call(
        bn_relu_kernel,
        out_shape=jax.ShapeDtypeStruct((N, H_pad, W, Cout), store_dtype),
        grid_spec=pltpu.PrefetchScalarGridSpec(
            num_scalar_prefetch=0,
            grid=grid,
            in_specs=[
                pl.BlockSpec((1, TILE_H, W, Cout), lambda n, h: (n, h, 0, 0)),
                pl.BlockSpec((1, Cout), lambda n, h: (0, 0)),
                pl.BlockSpec((1, Cout), lambda n, h: (0, 0)),
            ],
            out_specs=pl.BlockSpec((1, TILE_H, W, Cout),
                                   lambda n, h: (n, h, 0, 0)),
        ),
        compiler_params=pltpu.CompilerParams(
            dimension_semantics=("parallel", "parallel"),
            vmem_limit_bytes=vmem_limit),
        input_output_aliases={0: 0},            # overwrite conv intermediate
        cost_estimate=pl.CostEstimate(
            flops=3 * N * H_pad * W * Cout, transcendentals=0,
            bytes_accessed=2 * N * H_pad * W * Cout * st_item + 8 * Cout),
    )(conv_out, scale, shift)

    # --- glue: drop padded tail rows, cast to f32, (optionally) NHWC -> NCHW ---
    out = out_p
    if H_pad != H:
        out = out[:, :H]
    out = out.astype(jnp.float32)
    if out_format == "NHWC":
        return out
    return jnp.transpose(out, (0, 3, 1, 2))


def conv_batch_norm_ref(x_nchw, w_oihw, bias, gamma, beta):
    """Pure-JAX reference mirroring the PyTorch module (training-mode BN)."""
    out = jax.lax.conv_general_dilated(
        x_nchw, w_oihw, window_strides=(1, 1), padding=((1, 1), (1, 1)),
        dimension_numbers=("NCHW", "OIHW", "NCHW"),
        precision=jax.lax.Precision.HIGHEST,
    ) + bias.reshape(1, -1, 1, 1)
    mean = jnp.mean(out, axis=(0, 2, 3), keepdims=True)
    var = jnp.mean((out - mean) ** 2, axis=(0, 2, 3), keepdims=True)
    y = (out - mean) * jax.lax.rsqrt(var + BN_EPS)
    y = y * gamma.reshape(1, -1, 1, 1) + beta.reshape(1, -1, 1, 1)
    return jnp.maximum(y, 0.0)


if __name__ == "__main__":
    N, Cin, Cout, H, W = 2, 4, 8, 16, 16

    key = jax.random.PRNGKey(0)
    kx, kw, kb, kg, kbt = jax.random.split(key, 5)

    x = jax.random.normal(kx, (N, Cin, H, W), dtype=jnp.float32)
    # Deterministic synthetic parameters (same shapes as nn.Conv2d / nn.BatchNorm2d)
    fan_in = Cin * 3 * 3
    bound = 1.0 / np.sqrt(fan_in)
    w = jax.random.uniform(kw, (Cout, Cin, 3, 3), jnp.float32, -bound, bound)
    b = jax.random.uniform(kb, (Cout,), jnp.float32, -bound, bound)
    gamma = 1.0 + 0.1 * jax.random.normal(kg, (Cout,), dtype=jnp.float32)
    beta = 0.1 * jax.random.normal(kbt, (Cout,), dtype=jnp.float32)

    ref = jax.block_until_ready(conv_batch_norm_ref(x, w, b, gamma, beta))

    # f32 MXU path with a deliberately non-divisible TILE_H (=7): exercises the
    # padded-tail row masking + crop; tight tolerance check.
    out_f32 = jax.block_until_ready(
        conv_batch_norm(x, w, b, gamma, beta,
                        compute_dtype=jnp.float32, target_rows=112))
    np.testing.assert_allclose(np.asarray(out_f32), np.asarray(ref),
                               rtol=1e-4, atol=1e-4)

    # Default fast path: bf16 MXU operands + bf16 HBM round-trip of the conv
    # intermediate (aliased in phase 2); f32 stats / normalization / ReLU.
    out_bf16 = jax.block_until_ready(conv_batch_norm(x, w, b, gamma, beta))
    np.testing.assert_allclose(np.asarray(out_bf16), np.asarray(ref),
                               rtol=3e-2, atol=3e-2)

    print("KERNEL_OK")
</pallas_src>

<mosaic_0001>
module attributes {stable_mosaic.version = 11 : i64} {
  func.func @conv_stats_kernel(%arg0: i32, %arg1: i32, %arg2: memref<1x23x18x4xf32, #tpu.memory_space<vmem>>, %arg3: memref<36x128xf32, #tpu.memory_space<vmem>>, %arg4: memref<1x128xf32, #tpu.memory_space<vmem>>, %arg5: memref<1x7x16x8xf32, #tpu.memory_space<vmem>>, %arg6: memref<1x1x2x128xf32, #tpu.memory_space<vmem>>) attributes {dimension_semantics = [#tpu.dimension_semantics<parallel>, #tpu.dimension_semantics<parallel>], iteration_bounds = array<i64: 2, 3>, scalar_prefetch = 0 : i64, scratch_operands = 0 : i64, tpu.core_type = #tpu.core_type<tc>, window_params = [{transform_indices = @transform_0, window_bounds = array<i64: 1, 23, 18, 4>}, {pipeline_mode = #tpu.pipeline_mode<synchronous>, transform_indices = @transform_1, window_bounds = array<i64: 36, 128>}, {pipeline_mode = #tpu.pipeline_mode<synchronous>, transform_indices = @transform_2, window_bounds = array<i64: 1, 128>}, {transform_indices = @transform_3, window_bounds = array<i64: 1, 7, 16, 8>}, {transform_indices = @transform_4, window_bounds = array<i64: 1, 1, 2, 128>}]} {
    %c7_i32 = arith.constant 7 : i32
    %0 = arith.muli %arg1, %c7_i32 : i32
    %c0_i32 = arith.constant 0 : i32
    %1 = arith.addi %0, %c0_i32 : i32
    %c0 = arith.constant 0 : index
    %2 = arith.index_cast %1 : i32 to index
    %c0_0 = arith.constant 0 : index
    %c0_1 = arith.constant 0 : index
    %3 = vector.load %arg2[%c0, %2, %c0_0, %c0_1] : memref<1x23x18x4xf32, #tpu.memory_space<vmem>>, vector<1x7x16x4xf32>
    %4 = vector.shape_cast %3 : vector<1x7x16x4xf32> to vector<7x16x4xf32>
    %c0_i32_2 = arith.constant 0 : i32
    %5 = arith.addi %0, %c0_i32_2 : i32
    %c0_3 = arith.constant 0 : index
    %6 = arith.index_cast %5 : i32 to index
    %c1 = arith.constant 1 : index
    %c0_4 = arith.constant 0 : index
    %7 = vector.load %arg2[%c0_3, %6, %c1, %c0_4] : memref<1x23x18x4xf32, #tpu.memory_space<vmem>>, vector<1x7x16x4xf32>
    %8 = vector.shape_cast %7 : vector<1x7x16x4xf32> to vector<7x16x4xf32>
    %c0_i32_5 = arith.constant 0 : i32
    %9 = arith.addi %0, %c0_i32_5 : i32
    %c0_6 = arith.constant 0 : index
    %10 = arith.index_cast %9 : i32 to index
    %c2 = arith.constant 2 : index
    %c0_7 = arith.constant 0 : index
    %11 = vector.load %arg2[%c0_6, %10, %c2, %c0_7] : memref<1x23x18x4xf32, #tpu.memory_space<vmem>>, vector<1x7x16x4xf32>
    %12 = vector.shape_cast %11 : vector<1x7x16x4xf32> to vector<7x16x4xf32>
    %c1_i32 = arith.constant 1 : i32
    %13 = arith.addi %0, %c1_i32 : i32
    %c0_8 = arith.constant 0 : index
    %14 = arith.index_cast %13 : i32 to index
    %c0_9 = arith.constant 0 : index
    %c0_10 = arith.constant 0 : index
    %15 = vector.load %arg2[%c0_8, %14, %c0_9, %c0_10] : memref<1x23x18x4xf32, #tpu.memory_space<vmem>>, vector<1x7x16x4xf32>
    %16 = vector.shape_cast %15 : vector<1x7x16x4xf32> to vector<7x16x4xf32>
    %c1_i32_11 = arith.constant 1 : i32
    %17 = arith.addi %0, %c1_i32_11 : i32
    %c0_12 = arith.constant 0 : index
    %18 = arith.index_cast %17 : i32 to index
    %c1_13 = arith.constant 1 : index
    %c0_14 = arith.constant 0 : index
    %19 = vector.load %arg2[%c0_12, %18, %c1_13, %c0_14] : memref<1x23x18x4xf32, #tpu.memory_space<vmem>>, vector<1x7x16x4xf32>
    %20 = vector.shape_cast %19 : vector<1x7x16x4xf32> to vector<7x16x4xf32>
    %c1_i32_15 = arith.constant 1 : i32
    %21 = arith.addi %0, %c1_i32_15 : i32
    %c0_16 = arith.constant 0 : index
    %22 = arith.index_cast %21 : i32 to index
    %c2_17 = arith.constant 2 : index
    %c0_18 = arith.constant 0 : index
    %23 = vector.load %arg2[%c0_16, %22, %c2_17, %c0_18] : memref<1x23x18x4xf32, #tpu.memory_space<vmem>>, vector<1x7x16x4xf32>
    %24 = vector.shape_cast %23 : vector<1x7x16x4xf32> to vector<7x16x4xf32>
    %c2_i32 = arith.constant 2 : i32
    %25 = arith.addi %0, %c2_i32 : i32
    %c0_19 = arith.constant 0 : index
    %26 = arith.index_cast %25 : i32 to index
    %c0_20 = arith.constant 0 : index
    %c0_21 = arith.constant 0 : index
    %27 = vector.load %arg2[%c0_19, %26, %c0_20, %c0_21] : memref<1x23x18x4xf32, #tpu.memory_space<vmem>>, vector<1x7x16x4xf32>
    %28 = vector.shape_cast %27 : vector<1x7x16x4xf32> to vector<7x16x4xf32>
    %c2_i32_22 = arith.constant 2 : i32
    %29 = arith.addi %0, %c2_i32_22 : i32
    %c0_23 = arith.constant 0 : index
    %30 = arith.index_cast %29 : i32 to index
    %c1_24 = arith.constant 1 : index
    %c0_25 = arith.constant 0 : index
    %31 = vector.load %arg2[%c0_23, %30, %c1_24, %c0_25] : memref<1x23x18x4xf32, #tpu.memory_space<vmem>>, vector<1x7x16x4xf32>
    %32 = vector.shape_cast %31 : vector<1x7x16x4xf32> to vector<7x16x4xf32>
    %c2_i32_26 = arith.constant 2 : i32
    %33 = arith.addi %0, %c2_i32_26 : i32
    %c0_27 = arith.constant 0 : index
    %34 = arith.index_cast %33 : i32 to index
    %c2_28 = arith.constant 2 : index
    %c0_29 = arith.constant 0 : index
    %35 = vector.load %arg2[%c0_27, %34, %c2_28, %c0_29] : memref<1x23x18x4xf32, #tpu.memory_space<vmem>>, vector<1x7x16x4xf32>
    %36 = vector.shape_cast %35 : vector<1x7x16x4xf32> to vector<7x16x4xf32>
    %37 = tpu.concatenate %4, %8, %12, %16, %20, %24, %28, %32, %36 in 2 : vector<7x16x4xf32>, vector<7x16x4xf32>, vector<7x16x4xf32>, vector<7x16x4xf32>, vector<7x16x4xf32>, vector<7x16x4xf32>, vector<7x16x4xf32>, vector<7x16x4xf32>, vector<7x16x4xf32> -> vector<7x16x36xf32>
    %38 = vector.shape_cast %37 : vector<7x16x36xf32> to vector<112x36xf32>
    %c0_30 = arith.constant 0 : index
    %c0_31 = arith.constant 0 : index
    %39 = vector.load %arg3[%c0_30, %c0_31] : memref<36x128xf32, #tpu.memory_space<vmem>>, vector<36x128xf32>
    %cst = arith.constant dense<0.000000e+00> : vector<112x128xf32>
    %40 = tpu.matmul %38, %39, %cst {dimension_numbers = #tpu.dot_dimension_numbers<[1], [0], [0], [1], [0, 0, 1, 1], [], []>} : vector<112x36xf32>, vector<36x128xf32>, vector<112x128xf32> -> vector<112x128xf32>
    %c0_32 = arith.constant 0 : index
    %c0_33 = arith.constant 0 : index
    %41 = vector.load %arg4[%c0_32, %c0_33] : memref<1x128xf32, #tpu.memory_space<vmem>>, vector<1x128xf32>
    %42 = vector.broadcast %41 : vector<1x128xf32> to vector<112x128xf32>
    %43 = arith.addf %40, %42 : vector<112x128xf32>
    %44 = vector.extract_strided_slice %43 {offsets = [0, 0], sizes = [112, 8], strides = [1, 1]} : vector<112x128xf32> to vector<112x8xf32>
    %45 = vector.shape_cast %44 : vector<112x8xf32> to vector<1x7x16x8xf32>
    %c0_34 = arith.constant 0 : index
    %c0_35 = arith.constant 0 : index
    %c0_36 = arith.constant 0 : index
    %c0_37 = arith.constant 0 : index
    %46 = vector.load %arg5[%c0_34, %c0_35, %c0_36, %c0_37] : memref<1x7x16x8xf32, #tpu.memory_space<vmem>>, vector<1x7x16x8xf32>
    tpu.vector_store %arg5[%c0_34, %c0_35, %c0_36, %c0_37], %45 {strides = array<i32>} : memref<1x7x16x8xf32, #tpu.memory_space<vmem>>, vector<1x7x16x8xf32>,
    %c16_i32 = arith.constant 16 : i32
    %47 = arith.subi %c16_i32, %0 : i32
    %c16_i32_38 = arith.constant 16 : i32
    %48 = arith.muli %47, %c16_i32_38 : i32
    %49 = tpu.iota {dimensions = array<i32: 0>} : vector<112x128xi32>
    %50 = vector.broadcast %48 : i32 to vector<112x128xi32>
    %51 = arith.cmpi slt, %49, %50 : vector<112x128xi32>
    %cst_39 = arith.constant 0.000000e+00 : f32
    %52 = vector.broadcast %cst_39 : f32 to vector<112x128xf32>
    %53 = arith.select %51, %43, %52 : vector<112x128xi1>, vector<112x128xf32>
    %cst_40 = arith.constant dense<0.000000e+00> : vector<128xf32>
    %54 = vector.multi_reduction <add>, %53, %cst_40 [0] : vector<112x128xf32> to vector<128xf32>
    %55 = vector.shape_cast %54 : vector<128xf32> to vector<1x128xf32>
    %c0_41 = arith.constant 0 : index
    %c0_42 = arith.constant 0 : index
    %c0_43 = arith.constant 0 : index
    %c0_44 = arith.constant 0 : index
    %56 = vector.load %arg6[%c0_41, %c0_42, %c0_43, %c0_44] : memref<1x1x2x128xf32, #tpu.memory_space<vmem>>, vector<1x1x1x128xf32>
    %57 = vector.shape_cast %56 : vector<1x1x1x128xf32> to vector<1x128xf32>
    %58 = vector.shape_cast %55 : vector<1x128xf32> to vector<1x1x1x128xf32>
    tpu.vector_store %arg6[%c0_41, %c0_42, %c0_43, %c0_44], %58 {strides = array<i32>} : memref<1x1x2x128xf32, #tpu.memory_space<vmem>>, vector<1x1x1x128xf32>,
    %59 = arith.mulf %53, %53 : vector<112x128xf32>
    %cst_45 = arith.constant dense<0.000000e+00> : vector<128xf32>
    %60 = vector.multi_reduction <add>, %59, %cst_45 [0] : vector<112x128xf32> to vector<128xf32>
    %61 = vector.shape_cast %60 : vector<128xf32> to vector<1x128xf32>
    %c0_46 = arith.constant 0 : index
    %c0_47 = arith.constant 0 : index
    %c1_48 = arith.constant 1 : index
    %c0_49 = arith.constant 0 : index
    %62 = vector.load %arg6[%c0_46, %c0_47, %c1_48, %c0_49] : memref<1x1x2x128xf32, #tpu.memory_space<vmem>>, vector<1x1x1x128xf32>
    %63 = vector.shape_cast %62 : vector<1x1x1x128xf32> to vector<1x128xf32>
    %64 = vector.shape_cast %61 : vector<1x128xf32> to vector<1x1x1x128xf32>
    tpu.vector_store %arg6[%c0_46, %c0_47, %c1_48, %c0_49], %64 {strides = array<i32>} : memref<1x1x2x128xf32, #tpu.memory_space<vmem>>, vector<1x1x1x128xf32>,
    return
  }
  func.func @transform_0(%arg0: i32, %arg1: i32) -> (i32, i32, i32, i32) {
    %c0_i32 = arith.constant 0 : i32
    %c0_i32_0 = arith.constant 0 : i32
    %c0_i32_1 = arith.constant 0 : i32
    %c0_i32_2 = arith.constant 0 : i32
    return %arg0, %c0_i32, %c0_i32_0, %c0_i32_1 : i32, i32, i32, i32
  }
  func.func @transform_1(%arg0: i32, %arg1: i32) -> (i32, i32) {
    %c0_i32 = arith.constant 0 : i32
    %c0_i32_0 = arith.constant 0 : i32
    %c0_i32_1 = arith.constant 0 : i32
    return %c0_i32, %c0_i32_0 : i32, i32
  }
  func.func @transform_2(%arg0: i32, %arg1: i32) -> (i32, i32) {
    %c0_i32 = arith.constant 0 : i32
    %c0_i32_0 = arith.constant 0 : i32
    %c0_i32_1 = arith.constant 0 : i32
    return %c0_i32, %c0_i32_0 : i32, i32
  }
  func.func @transform_3(%arg0: i32, %arg1: i32) -> (i32, i32, i32, i32) {
    %c0_i32 = arith.constant 0 : i32
    %c0_i32_0 = arith.constant 0 : i32
    %c0_i32_1 = arith.constant 0 : i32
    return %arg0, %arg1, %c0_i32, %c0_i32_0 : i32, i32, i32, i32
  }
  func.func @transform_4(%arg0: i32, %arg1: i32) -> (i32, i32, i32, i32) {
    %c0_i32 = arith.constant 0 : i32
    %c0_i32_0 = arith.constant 0 : i32
    %c0_i32_1 = arith.constant 0 : i32
    return %arg0, %arg1, %c0_i32, %c0_i32_0 : i32, i32, i32, i32
  }
}

module attributes {stable_mosaic.version = 11 : i64} {
  func.func @bn_relu_kernel(%arg0: i32, %arg1: i32, %arg2: memref<1x7x16x8xf32, #tpu.memory_space<vmem>>, %arg3: memref<1x8xf32, #tpu.memory_space<vmem>>, %arg4: memref<1x8xf32, #tpu.memory_space<vmem>>, %arg5: memref<1x7x16x8xf32, #tpu.memory_space<vmem>>) attributes {dimension_semantics = [#tpu.dimension_semantics<parallel>, #tpu.dimension_semantics<parallel>], iteration_bounds = array<i64: 2, 3>, scalar_prefetch = 0 : i64, scratch_operands = 0 : i64, tpu.core_type = #tpu.core_type<tc>, window_params = [{transform_indices = @transform_0, window_bounds = array<i64: 1, 7, 16, 8>}, {pipeline_mode = #tpu.pipeline_mode<synchronous>, transform_indices = @transform_1, window_bounds = array<i64: 1, 8>}, {pipeline_mode = #tpu.pipeline_mode<synchronous>, transform_indices = @transform_2, window_bounds = array<i64: 1, 8>}, {transform_indices = @transform_3, window_bounds = array<i64: 1, 7, 16, 8>}]} {
    %c0 = arith.constant 0 : index
    %c0_0 = arith.constant 0 : index
    %c0_1 = arith.constant 0 : index
    %c0_2 = arith.constant 0 : index
    %0 = vector.load %arg2[%c0, %c0_0, %c0_1, %c0_2] : memref<1x7x16x8xf32, #tpu.memory_space<vmem>>, vector<1x7x16x8xf32>
    %c0_3 = arith.constant 0 : index
    %c0_4 = arith.constant 0 : index
    %1 = vector.load %arg3[%c0_3, %c0_4] : memref<1x8xf32, #tpu.memory_space<vmem>>, vector<1x8xf32>
    %2 = vector.shape_cast %1 : vector<1x8xf32> to vector<1x1x1x8xf32>
    %c0_5 = arith.constant 0 : index
    %c0_6 = arith.constant 0 : index
    %3 = vector.load %arg4[%c0_5, %c0_6] : memref<1x8xf32, #tpu.memory_space<vmem>>, vector<1x8xf32>
    %4 = vector.shape_cast %3 : vector<1x8xf32> to vector<1x1x1x8xf32>
    %5 = vector.broadcast %2 : vector<1x1x1x8xf32> to vector<1x7x16x8xf32>
    %6 = arith.mulf %0, %5 : vector<1x7x16x8xf32>
    %7 = vector.broadcast %4 : vector<1x1x1x8xf32> to vector<1x7x16x8xf32>
    %8 = arith.addf %6, %7 : vector<1x7x16x8xf32>
    %cst = arith.constant 0.000000e+00 : f32
    %9 = vector.broadcast %cst : f32 to vector<1x7x16x8xf32>
    %10 = arith.maximumf %8, %9 : vector<1x7x16x8xf32>
    %c0_7 = arith.constant 0 : index
    %c0_8 = arith.constant 0 : index
    %c0_9 = arith.constant 0 : index
    %c0_10 = arith.constant 0 : index
    %11 = vector.load %arg5[%c0_7, %c0_8, %c0_9, %c0_10] : memref<1x7x16x8xf32, #tpu.memory_space<vmem>>, vector<1x7x16x8xf32>
    tpu.vector_store %arg5[%c0_7, %c0_8, %c0_9, %c0_10], %10 {strides = array<i32>} : memref<1x7x16x8xf32, #tpu.memory_space<vmem>>, vector<1x7x16x8xf32>,
    return
  }
  func.func @transform_0(%arg0: i32, %arg1: i32) -> (i32, i32, i32, i32) {
    %c0_i32 = arith.constant 0 : i32
    %c0_i32_0 = arith.constant 0 : i32
    %c0_i32_1 = arith.constant 0 : i32
    return %arg0, %arg1, %c0_i32, %c0_i32_0 : i32, i32, i32, i32
  }
  func.func @transform_1(%arg0: i32, %arg1: i32) -> (i32, i32) {
    %c0_i32 = arith.constant 0 : i32
    %c0_i32_0 = arith.constant 0 : i32
    %c0_i32_1 = arith.constant 0 : i32
    return %c0_i32, %c0_i32_0 : i32, i32
  }
  func.func @transform_2(%arg0: i32, %arg1: i32) -> (i32, i32) {
    %c0_i32 = arith.constant 0 : i32
    %c0_i32_0 = arith.constant 0 : i32
    %c0_i32_1 = arith.constant 0 : i32
    return %c0_i32, %c0_i32_0 : i32, i32
  }
  func.func @transform_3(%arg0: i32, %arg1: i32) -> (i32, i32, i32, i32) {
    %c0_i32 = arith.constant 0 : i32
    %c0_i32_0 = arith.constant 0 : i32
    %c0_i32_1 = arith.constant 0 : i32
    return %arg0, %arg1, %c0_i32, %c0_i32_0 : i32, i32, i32, i32
  }
}

</mosaic_0001>

<llo_original>
// kernel: conv_batch_norm.3
$region0: #{conv_batch_norm.3}
  #allocation0 [shape = 'u32[]', space=smem, size = 0x4, offset = 0x4, fixed_abs, tag = 'smem constant byte address 0x4 - core index']
  #allocation1 [shape = 'u32[144,128]{1,0:T(1,128)}', space=vmem, size = 0x12000, scoped, tag = 'internal scratch']
  %s0 = inlined_call_operand.vmem [shape: f32[2,21,16,8], index: 0, kind: input, shape index: {}, may-alias: {0,3}]
  %s1 = inlined_call_operand.vmem [shape: f32[1,8], index: 1, kind: input, shape index: {}]
  %s2 = inlined_call_operand.vmem [shape: f32[1,8], index: 2, kind: input, shape index: {}]
  %s3 = inlined_call_operand.vmem [shape: f32[2,21,16,8], index: 3, kind: output, shape index: {}, may-alias: {0,3}]
  %s4 = sld [smem:[#allocation0]]
  $region45: #{conv_batch_norm.3} parent=0
    _
  %s6 = ssub.s32 1, %s4
  %s7 = scalar_select 0, %s6, %s4
  loop: start=0, step=1, limit=8
  $region2: #{conv_batch_norm.3} parent=0 // loop_pre_header
    _
  $region3: #{conv_batch_norm.3} parent=0 // loop_header
    %s9 = sphi 0, %s13
    %p10 = scmp.ge.s32.totalorder %s9, 8
    %s16 = sphi 0, %s28
    %s17 = sphi 0, %s24
    %s18 = sphi 0, %s16
    %s19 = sphi 0, %s17
    %s20 = sphi 0, %s18
    %s21 = sphi 0, %s19
    %s33 = sphi 0, %s35
    %s36 = sphi 0, %s33
    %s37 = sphi 0, %s36
    %s53 = sphi 0, %s37
    %s57 = sphi 0, %s57
    %s59 = sphi 0, %s57
    %s60 = sphi 0, %s59
    %s74 = sphi 0, %s60
    %s78 = sphi 0, %s78
    %s80 = sphi 0, %s78
    %s81 = sphi 0, %s80
    %s95 = sphi 0, %s81
    %s103 = sphi 0, %s105
    %s106 = sphi 0, %s103
    %s107 = sphi 0, %s106
    %s123 = sphi 0, %s107
  $region4: #{conv_batch_norm.3} parent=0 // loop_header_branch
    %12 = sbr.rel (%p10) target = $region8
  $region5: #{conv_batch_norm.3} parent=0 // loop_body
    %s14 = ssub.s32 %s9, 1
    %s15 = ssub.s32 %s9, 2
    %s22 = sadd.s32 1, %s17
    %p23 = scmp.ge.s32.totalorder %s22, 3
    %s24 = scalar_select %p23, 0, %s22
    %s25 = sadd.s32 1, %s16
    %s26 = scalar_select %p23, %s25, %s16
    %p27 = scmp.ge.s32.totalorder %s26, 2
    %s28 = scalar_select %p27, 0, %s26
    %s29 = ssub.s32 %s16, %s28
    %s30 = ssub.s32 %s17, %s24
    %s31 = sor.u32 %s29, %s30
    %p32 = scmp.eq.s32.totalorder %s31, 0
    %s34 = sadd.s32 %s33, 1
    %s35 = scalar_select %p32, %s33, %s34
    %p38 = pneg %p32
    %p39 = scmp.eq.s32.totalorder %s9, 5
    %p40 = por %p38, %p39
    %p41 = scmp.ne.s32.totalorder %s33, %s36
    %p42 = scmp.eq.s32.totalorder %s9, 0
    %p43 = por %p41, %p42
    %p44 = scmp.ne.s32.totalorder %s33, %s36
    %p45 = scmp.eq.s32.totalorder %s14, 5
    %p46 = por %p44, %p45
    %p47 = scmp.ne.s32.totalorder %s36, %s37
    %p48 = scmp.eq.s32.totalorder %s14, 0
    %p49 = por %p47, %p48
    %p50 = scmp.ne.s32.totalorder %s36, %s37
    %p51 = scmp.eq.s32.totalorder %s15, 5
    %p52 = por %p50, %p51
    %p54 = scmp.ne.s32.totalorder %s37, %s53
    %p55 = scmp.eq.s32.totalorder %s15, 0
    %p56 = por %p54, %p55
    %s58 = sadd.s32 %s57, 1
    %p61 = scmp.eq.s32.totalorder %s9, 5
    %p62 = scmp.ne.s32.totalorder %s57, %s59
    %p63 = scmp.eq.s32.totalorder %s9, 0
    %p64 = por %p62, %p63
    %p65 = scmp.ne.s32.totalorder %s57, %s59
    %p66 = scmp.eq.s32.totalorder %s14, 5
    %p67 = por %p65, %p66
    %p68 = scmp.ne.s32.totalorder %s59, %s60
    %p69 = scmp.eq.s32.totalorder %s14, 0
    %p70 = por %p68, %p69
    %p71 = scmp.ne.s32.totalorder %s59, %s60
    %p72 = scmp.eq.s32.totalorder %s15, 5
    %p73 = por %p71, %p72
    %p75 = scmp.ne.s32.totalorder %s60, %s74
    %p76 = scmp.eq.s32.totalorder %s15, 0
    %p77 = por %p75, %p76
    %s79 = sadd.s32 %s78, 1
    %p82 = scmp.eq.s32.totalorder %s9, 5
    %p83 = scmp.ne.s32.totalorder %s78, %s80
    %p84 = scmp.eq.s32.totalorder %s9, 0
    %p85 = por %p83, %p84
    %p86 = scmp.ne.s32.totalorder %s78, %s80
    %p87 = scmp.eq.s32.totalorder %s14, 5
    %p88 = por %p86, %p87
    %p89 = scmp.ne.s32.totalorder %s80, %s81
    %p90 = scmp.eq.s32.totalorder %s14, 0
    %p91 = por %p89, %p90
    %p92 = scmp.ne.s32.totalorder %s80, %s81
    %p93 = scmp.eq.s32.totalorder %s15, 5
    %p94 = por %p92, %p93
    %p96 = scmp.ne.s32.totalorder %s81, %s95
    %p97 = scmp.eq.s32.totalorder %s15, 0
    %p98 = por %p96, %p97
    %s99 = ssub.s32 %s16, %s28
    %s100 = ssub.s32 %s17, %s24
    %s101 = sor.u32 %s99, %s100
    %p102 = scmp.eq.s32.totalorder %s101, 0
    %s104 = sadd.s32 %s103, 1
    %s105 = scalar_select %p102, %s103, %s104
    %p108 = pneg %p102
    %p109 = scmp.eq.s32.totalorder %s9, 5
    %p110 = por %p108, %p109
    %p111 = scmp.ne.s32.totalorder %s103, %s106
    %p112 = scmp.eq.s32.totalorder %s9, 0
    %p113 = por %p111, %p112
    %p114 = scmp.ne.s32.totalorder %s103, %s106
    %p115 = scmp.eq.s32.totalorder %s14, 5
    %p116 = por %p114, %p115
    %p117 = scmp.ne.s32.totalorder %s106, %s107
    %p118 = scmp.eq.s32.totalorder %s14, 0
    %p119 = por %p117, %p118
    %p120 = scmp.ne.s32.totalorder %s106, %s107
    %p121 = scmp.eq.s32.totalorder %s15, 5
    %p122 = por %p120, %p121
    %p124 = scmp.ne.s32.totalorder %s107, %s123
    %p125 = scmp.eq.s32.totalorder %s15, 0
    %p126 = por %p124, %p125
    %p127 = scmp.le.s32.totalorder 1, %s9
    %p128 = scmp.lt.s32.totalorder %s9, 7
    %p129 = pnand %p127, %p128
    %p130 = pneg %p129
    // Predicated region
    $region9: #{conv_batch_norm.3} parent=5 // pred_check
      _
    $region10: #{conv_batch_norm.3} parent=5 // pred_check_branch
      %132 = sbr.rel (%p129) target = $region12
    $region11: #{conv_batch_norm.3} parent=5 // pred_region
      %s133 = ssub.s32 %s9, 1
      // Predicated region
      $region13: #{conv_batch_norm.3} parent=11 // pred_check
        %p134 = pneg %p70
      $region14: #{conv_batch_norm.3} parent=11 // pred_check_branch
        %136 = sbr.rel (%p134) target = $region16
      $region15: #{conv_batch_norm.3} parent=11 // pred_region
        _
      $region16: #{conv_batch_norm.3} parent=11 // pred_fallthru
        _
      // Predicated region
      $region17: #{conv_batch_norm.3} parent=11 // pred_check
        %p137 = pneg %p91
      $region18: #{conv_batch_norm.3} parent=11 // pred_check_branch
        %139 = sbr.rel (%p137) target = $region20
      $region19: #{conv_batch_norm.3} parent=11 // pred_region
        _
      $region20: #{conv_batch_norm.3} parent=11 // pred_fallthru
        _
    $region12: #{conv_batch_norm.3} parent=5 // pred_fallthru
      _
    %p140 = scmp.lt.s32.totalorder %s9, 6
    // Predicated region
    $region21: #{conv_batch_norm.3} parent=5 // pred_check
      %p141 = pneg %p140
    $region22: #{conv_batch_norm.3} parent=5 // pred_check_branch
      %143 = sbr.rel (%p141) target = $region24
    $region23: #{conv_batch_norm.3} parent=5 // pred_region
      // Predicated region
      $region25: #{conv_batch_norm.3} parent=23 // pred_check
        %p144 = pneg %p43
      $region26: #{conv_batch_norm.3} parent=23 // pred_check_branch
        %146 = sbr.rel (%p144) target = $region28
      $region27: #{conv_batch_norm.3} parent=23 // pred_region
        %s147 = smul.u32 7, %s17
        %p148 = scmp.lt.s32.totalorder %s16, 1
        %s149 = scalar_select %p148, %s16, 1
        %p150 = scmp.lt.s32.totalorder %s147, 20
        %s151 = scalar_select %p150, %s147, 20
        %s152 = smul.addr %s151, 2
        %s153 = smul.addr %s149, 42
        %s154 = sadd.s32 %s152, %s153
        %s155 = smul.addr %s154, 8
        %s156 = scalar_lea.vmem %s0, %s155
        %s157 = smul.u32 7, %s17
      $region28: #{conv_batch_norm.3} parent=23 // pred_fallthru
        _
    $region24: #{conv_batch_norm.3} parent=5 // pred_fallthru
      _
    %p158 = scmp.le.s32.totalorder 1, %s9
    %p159 = scmp.lt.s32.totalorder %s9, 7
    %p160 = pnand %p158, %p159
    %p161 = pneg %p160
    // Predicated region
    $region29: #{conv_batch_norm.3} parent=5 // pred_check
      _
    $region30: #{conv_batch_norm.3} parent=5 // pred_check_branch
      %163 = sbr.rel (%p160) target = $region32
    $region31: #{conv_batch_norm.3} parent=5 // pred_region
      %s164 = ssub.s32 %s9, 1
      %s165 = smul.u32 7, %s19
      %p166 = scmp.lt.s32.totalorder %s18, 1
      %s167 = scalar_select %p166, %s18, 1
      %p168 = scmp.lt.s32.totalorder %s165, 20
      %s169 = scalar_select %p168, %s165, 20
      %s170 = smul.addr %s169, 2
      %s171 = smul.addr %s167, 42
      %s172 = sadd.s32 %s170, %s171
      %s173 = smul.addr %s172, 8
      %s174 = scalar_lea.vmem %s0, %s173
      %p175 = pneg %p49
      %p176 = pneg %p46
      %p177 = pneg %p70
      %p178 = pneg %p67
      %p179 = pneg %p91
      %p180 = pneg %p88
      %p181 = pneg %p119
      %p182 = pneg %p116
      %s183 = smul.u32 7, %s19
      %p184 = scmp.lt.s32.totalorder %s18, 1
      %s185 = scalar_select %p184, %s18, 1
      %p186 = scmp.lt.s32.totalorder %s183, 20
      %s187 = scalar_select %p186, %s183, 20
      %s188 = smul.addr %s187, 2
      %s189 = smul.addr %s185, 42
      %s190 = sadd.s32 %s188, %s189
      %s191 = smul.addr %s190, 8
      %s192 = scalar_lea.vmem %s3, %s191
      %s193 = smul.u32 7, %s19
      %p194 = scmp.lt.s32.totalorder %s18, 1
      %s195 = scalar_select %p194, %s18, 1
      %p196 = scmp.lt.s32.totalorder %s193, 20
      %s197 = scalar_select %p196, %s193, 20
      %s198 = smul.addr %s197, 2
      %s199 = smul.addr %s195, 42
      %s200 = sadd.s32 %s198, %s199
      %s201 = smul.addr %s200, 8
      %s202 = scalar_lea.vmem %s0, %s201
      %s203 = smul.u32 7, %s19
      %s204 = smul.u32 7, %s19
      %p205 = scmp.lt.s32.totalorder %s18, 1
      %s206 = scalar_select %p205, %s18, 1
      %p207 = scmp.lt.s32.totalorder %s204, 20
      %s208 = scalar_select %p207, %s204, 20
      %s209 = smul.addr %s208, 2
      %s210 = smul.addr %s206, 42
      %s211 = sadd.s32 %s209, %s210
      %s212 = smul.addr %s211, 8
      %s213 = scalar_lea.vmem %s3, %s212
      %s214 = smul.u32 7, %s19
      %v215 = vld [vmem:[%s202] sm:$0xff]
      %v216 = vld [vmem:[%s202 + $0x8] sm:$0xff]
      %v217 = vld [vmem:[%s202 + $0x10] sm:$0xff]
      %v218 = vld [vmem:[%s202 + $0x18] sm:$0xff]
      %v219 = vld [vmem:[%s202 + $0x20] sm:$0xff]
      %v220 = vld [vmem:[%s202 + $0x28] sm:$0xff]
      %v221 = vld [vmem:[%s202 + $0x30] sm:$0xff]
      %v222 = vld [vmem:[%s202 + $0x38] sm:$0xff]
      %v223 = vld [vmem:[%s202 + $0x40] sm:$0xff]
      %v224 = vld [vmem:[%s202 + $0x48] sm:$0xff]
      %v225 = vld [vmem:[%s202 + $0x50] sm:$0xff]
      %v226 = vld [vmem:[%s202 + $0x58] sm:$0xff]
      %v227 = vld [vmem:[%s202 + $0x60] sm:$0xff]
      %v228 = vld [vmem:[%s202 + $0x68] sm:$0xff]
      %v229 = vld [vmem:[%s1] sm:$0x1]
      %v230 = vld [vmem:[%s2] sm:$0x1]
      %v232 = vlaneseq
      %v233 = vshrl.u32 %v232, 7
      %v234 = vsub.s32 0, %v233
      %v235 = vrot.slane %v229, %v234
      %v237 = vmul.f32 %v215, %v235
      %v238 = vmul.f32 %v216, %v235
      %v239 = vmul.f32 %v217, %v235
      %v240 = vmul.f32 %v218, %v235
      %v241 = vmul.f32 %v219, %v235
      %v242 = vmul.f32 %v220, %v235
      %v243 = vmul.f32 %v221, %v235
      %v244 = vmul.f32 %v222, %v235
      %v245 = vmul.f32 %v223, %v235
      %v246 = vmul.f32 %v224, %v235
      %v247 = vmul.f32 %v225, %v235
      %v248 = vmul.f32 %v226, %v235
      %v249 = vmul.f32 %v227, %v235
      %v250 = vmul.f32 %v228, %v235
      %v252 = vlaneseq
      %v253 = vshrl.u32 %v252, 7
      %v254 = vsub.s32 0, %v253
      %v255 = vrot.slane %v230, %v254
      %v257 = vadd.f32 %v237, %v255
      %v258 = vadd.f32 %v238, %v255
      %v259 = vadd.f32 %v239, %v255
      %v260 = vadd.f32 %v240, %v255
      %v261 = vadd.f32 %v241, %v255
      %v262 = vadd.f32 %v242, %v255
      %v263 = vadd.f32 %v243, %v255
      %v264 = vadd.f32 %v244, %v255
      %v265 = vadd.f32 %v245, %v255
      %v266 = vadd.f32 %v246, %v255
      %v267 = vadd.f32 %v247, %v255
      %v268 = vadd.f32 %v248, %v255
      %v269 = vadd.f32 %v249, %v255
      %v270 = vadd.f32 %v250, %v255
      %v271 = vmax.f32 %v257, 0.0
      %v272 = vmax.f32 %v258, 0.0
      %v273 = vmax.f32 %v259, 0.0
      %v274 = vmax.f32 %v260, 0.0
      %v275 = vmax.f32 %v261, 0.0
      %v276 = vmax.f32 %v262, 0.0
      %v277 = vmax.f32 %v263, 0.0
      %v278 = vmax.f32 %v264, 0.0
      %v279 = vmax.f32 %v265, 0.0
      %v280 = vmax.f32 %v266, 0.0
      %v281 = vmax.f32 %v267, 0.0
      %v282 = vmax.f32 %v268, 0.0
      %v283 = vmax.f32 %v269, 0.0
      %v284 = vmax.f32 %v270, 0.0
      %vm285 = vcmask 64512
      %286 = vst.msk [vmem:[%s213] sm:$0xff] %vm285, %v271
      %287 = vst.msk [vmem:[%s213 + $0x8] sm:$0xff] %vm285, %v272
      %288 = vst.msk [vmem:[%s213 + $0x10] sm:$0xff] %vm285, %v273
      %289 = vst.msk [vmem:[%s213 + $0x18] sm:$0xff] %vm285, %v274
      %290 = vst.msk [vmem:[%s213 + $0x20] sm:$0xff] %vm285, %v275
      %291 = vst.msk [vmem:[%s213 + $0x28] sm:$0xff] %vm285, %v276
      %292 = vst.msk [vmem:[%s213 + $0x30] sm:$0xff] %vm285, %v277
      %293 = vst.msk [vmem:[%s213 + $0x38] sm:$0xff] %vm285, %v278
      %294 = vst.msk [vmem:[%s213 + $0x40] sm:$0xff] %vm285, %v279
      %295 = vst.msk [vmem:[%s213 + $0x48] sm:$0xff] %vm285, %v280
      %296 = vst.msk [vmem:[%s213 + $0x50] sm:$0xff] %vm285, %v281
      %297 = vst.msk [vmem:[%s213 + $0x58] sm:$0xff] %vm285, %v282
      %298 = vst.msk [vmem:[%s213 + $0x60] sm:$0xff] %vm285, %v283
      %299 = vst.msk [vmem:[%s213 + $0x68] sm:$0xff] %vm285, %v284
      %s300 = smul.u32 7, %s19
      %p301 = scmp.lt.s32.totalorder %s18, 1
      %s302 = scalar_select %p301, %s18, 1
      %p303 = scmp.lt.s32.totalorder %s300, 20
      %s304 = scalar_select %p303, %s300, 20
      %s305 = smul.addr %s304, 2
      %s306 = smul.addr %s302, 42
      %s307 = sadd.s32 %s305, %s306
      %s308 = smul.addr %s307, 8
      %s309 = scalar_lea.vmem %s3, %s308
      // Predicated region
      $region33: #{conv_batch_norm.3} parent=31 // pred_check
        %p310 = pneg %p116
      $region34: #{conv_batch_norm.3} parent=31 // pred_check_branch
        %312 = sbr.rel (%p310) target = $region36
      $region35: #{conv_batch_norm.3} parent=31 // pred_region
        %s313 = smul.u32 7, %s19
      $region36: #{conv_batch_norm.3} parent=31 // pred_fallthru
        _
    $region32: #{conv_batch_norm.3} parent=5 // pred_fallthru
      _
    %p314 = scmp.le.s32.totalorder 2, %s9
    // Predicated region
    $region37: #{conv_batch_norm.3} parent=5 // pred_check
      %p315 = pneg %p314
    $region38: #{conv_batch_norm.3} parent=5 // pred_check_branch
      %317 = sbr.rel (%p315) target = $region40
    $region39: #{conv_batch_norm.3} parent=5 // pred_region
      %s318 = ssub.s32 %s9, 2
      // Predicated region
      $region41: #{conv_batch_norm.3} parent=39 // pred_check
        %p319 = pneg %p122
      $region42: #{conv_batch_norm.3} parent=39 // pred_check_branch
        %321 = sbr.rel (%p319) target = $region44
      $region43: #{conv_batch_norm.3} parent=39 // pred_region
        %s322 = smul.u32 7, %s21
        %p323 = scmp.lt.s32.totalorder %s20, 1
        %s324 = scalar_select %p323, %s20, 1
        %p325 = scmp.lt.s32.totalorder %s322, 20
        %s326 = scalar_select %p325, %s322, 20
        %s327 = smul.addr %s326, 2
        %s328 = smul.addr %s324, 42
        %s329 = sadd.s32 %s327, %s328
        %s330 = smul.addr %s329, 8
        %s331 = scalar_lea.vmem %s3, %s330
      $region44: #{conv_batch_norm.3} parent=39 // pred_fallthru
        _
    $region40: #{conv_batch_norm.3} parent=5 // pred_fallthru
      _
  $region6: #{conv_batch_norm.3} parent=0 // loop_footer
    %s13 = sadd.s32 1, %s9
  $region7: #{conv_batch_norm.3} parent=0 // loop_footer_branch
    %8 = sbr.rel target = $region3
  $region8: #{conv_batch_norm.3} parent=0 // loop_exit
    _

// kernel: conv_batch_norm.2
$region0: #{conv_batch_norm.2}
  #allocation0 [shape = 'u32[]', space=smem, size = 0x4, offset = 0x4, fixed_abs, tag = 'smem constant byte address 0x4 - core index']
  #allocation1 [shape = 'u32[144,128]{1,0:T(1,128)}', space=vmem, size = 0x12000, scoped, tag = 'internal scratch']
  %s0 = inlined_call_operand.vmem [shape: f32[2,23,18,4], index: 0, kind: input, shape index: {}]
  %s1 = inlined_call_operand.vmem [shape: f32[36,128], index: 1, kind: input, shape index: {}]
  %s2 = inlined_call_operand.vmem [shape: f32[1,128], index: 2, kind: input, shape index: {}]
  %s3 = inlined_call_operand.vmem [shape: f32[2,21,16,8], index: 3, kind: output, shape index: {0}]
  %s4 = inlined_call_operand.vmem [shape: f32[2,3,2,128], index: 4, kind: output, shape index: {1}]
  %5 = xla_tuple %s3, %s4
  %s6 = sld [smem:[#allocation0]]
  $region53: #{conv_batch_norm.2} parent=0
    _
  %s8 = ssub.s32 1, %s6
  %s9 = scalar_select 0, %s8, %s6
  loop: start=0, step=1, limit=8
  $region2: #{conv_batch_norm.2} parent=0 // loop_pre_header
    _
  $region3: #{conv_batch_norm.2} parent=0 // loop_header
    %s11 = sphi 0, %s15
    %p12 = scmp.ge.s32.totalorder %s11, 8
    %s18 = sphi 0, %s30
    %s19 = sphi 0, %s26
    %s20 = sphi 0, %s18
    %s21 = sphi 0, %s19
    %s22 = sphi 0, %s20
    %s23 = sphi 0, %s21
    %s33 = sphi 0, %s35
    %s36 = sphi 0, %s33
    %s37 = sphi 0, %s36
    %s53 = sphi 0, %s37
    %s57 = sphi 0, %s57
    %s59 = sphi 0, %s57
    %s60 = sphi 0, %s59
    %s74 = sphi 0, %s60
    %s78 = sphi 0, %s78
    %s80 = sphi 0, %s78
    %s81 = sphi 0, %s80
    %s95 = sphi 0, %s81
    %s103 = sphi 0, %s105
    %s106 = sphi 0, %s103
    %s107 = sphi 0, %s106
    %s123 = sphi 0, %s107
    %s131 = sphi 0, %s133
    %s134 = sphi 0, %s131
    %s135 = sphi 0, %s134
    %s151 = sphi 0, %s135
  $region4: #{conv_batch_norm.2} parent=0 // loop_header_branch
    %14 = sbr.rel (%p12) target = $region8
  $region5: #{conv_batch_norm.2} parent=0 // loop_body
    %s16 = ssub.s32 %s11, 1
    %s17 = ssub.s32 %s11, 2
    %s24 = sadd.s32 1, %s19
    %p25 = scmp.ge.s32.totalorder %s24, 3
    %s26 = scalar_select %p25, 0, %s24
    %s27 = sadd.s32 1, %s18
    %s28 = scalar_select %p25, %s27, %s18
    %p29 = scmp.ge.s32.totalorder %s28, 2
    %s30 = scalar_select %p29, 0, %s28
    %s31 = ssub.s32 %s18, %s30
    %p32 = scmp.eq.s32.totalorder %s31, 0
    %s34 = sadd.s32 %s33, 1
    %s35 = scalar_select %p32, %s33, %s34
    %p38 = pneg %p32
    %p39 = scmp.eq.s32.totalorder %s11, 5
    %p40 = por %p38, %p39
    %p41 = scmp.ne.s32.totalorder %s33, %s36
    %p42 = scmp.eq.s32.totalorder %s11, 0
    %p43 = por %p41, %p42
    %p44 = scmp.ne.s32.totalorder %s33, %s36
    %p45 = scmp.eq.s32.totalorder %s16, 5
    %p46 = por %p44, %p45
    %p47 = scmp.ne.s32.totalorder %s36, %s37
    %p48 = scmp.eq.s32.totalorder %s16, 0
    %p49 = por %p47, %p48
    %p50 = scmp.ne.s32.totalorder %s36, %s37
    %p51 = scmp.eq.s32.totalorder %s17, 5
    %p52 = por %p50, %p51
    %p54 = scmp.ne.s32.totalorder %s37, %s53
    %p55 = scmp.eq.s32.totalorder %s17, 0
    %p56 = por %p54, %p55
    %s58 = sadd.s32 %s57, 1
    %p61 = scmp.eq.s32.totalorder %s11, 5
    %p62 = scmp.ne.s32.totalorder %s57, %s59
    %p63 = scmp.eq.s32.totalorder %s11, 0
    %p64 = por %p62, %p63
    %p65 = scmp.ne.s32.totalorder %s57, %s59
    %p66 = scmp.eq.s32.totalorder %s16, 5
    %p67 = por %p65, %p66
    %p68 = scmp.ne.s32.totalorder %s59, %s60
    %p69 = scmp.eq.s32.totalorder %s16, 0
    %p70 = por %p68, %p69
    %p71 = scmp.ne.s32.totalorder %s59, %s60
    %p72 = scmp.eq.s32.totalorder %s17, 5
    %p73 = por %p71, %p72
    %p75 = scmp.ne.s32.totalorder %s60, %s74
    %p76 = scmp.eq.s32.totalorder %s17, 0
    %p77 = por %p75, %p76
    %s79 = sadd.s32 %s78, 1
    %p82 = scmp.eq.s32.totalorder %s11, 5
    %p83 = scmp.ne.s32.totalorder %s78, %s80
    %p84 = scmp.eq.s32.totalorder %s11, 0
    %p85 = por %p83, %p84
    %p86 = scmp.ne.s32.totalorder %s78, %s80
    %p87 = scmp.eq.s32.totalorder %s16, 5
    %p88 = por %p86, %p87
    %p89 = scmp.ne.s32.totalorder %s80, %s81
    %p90 = scmp.eq.s32.totalorder %s16, 0
    %p91 = por %p89, %p90
    %p92 = scmp.ne.s32.totalorder %s80, %s81
    %p93 = scmp.eq.s32.totalorder %s17, 5
    %p94 = por %p92, %p93
    %p96 = scmp.ne.s32.totalorder %s81, %s95
    %p97 = scmp.eq.s32.totalorder %s17, 0
    %p98 = por %p96, %p97
    %s99 = ssub.s32 %s18, %s30
    %s100 = ssub.s32 %s19, %s26
    %s101 = sor.u32 %s99, %s100
    %p102 = scmp.eq.s32.totalorder %s101, 0
    %s104 = sadd.s32 %s103, 1
    %s105 = scalar_select %p102, %s103, %s104
    %p108 = pneg %p102
    %p109 = scmp.eq.s32.totalorder %s11, 5
    %p110 = por %p108, %p109
    %p111 = scmp.ne.s32.totalorder %s103, %s106
    %p112 = scmp.eq.s32.totalorder %s11, 0
    %p113 = por %p111, %p112
    %p114 = scmp.ne.s32.totalorder %s103, %s106
    %p115 = scmp.eq.s32.totalorder %s16, 5
    %p116 = por %p114, %p115
    %p117 = scmp.ne.s32.totalorder %s106, %s107
    %p118 = scmp.eq.s32.totalorder %s16, 0
    %p119 = por %p117, %p118
    %p120 = scmp.ne.s32.totalorder %s106, %s107
    %p121 = scmp.eq.s32.totalorder %s17, 5
    %p122 = por %p120, %p121
    %p124 = scmp.ne.s32.totalorder %s107, %s123
    %p125 = scmp.eq.s32.totalorder %s17, 0
    %p126 = por %p124, %p125
    %s127 = ssub.s32 %s18, %s30
    %s128 = ssub.s32 %s19, %s26
    %s129 = sor.u32 %s127, %s128
    %p130 = scmp.eq.s32.totalorder %s129, 0
    %s132 = sadd.s32 %s131, 1
    %s133 = scalar_select %p130, %s131, %s132
    %p136 = pneg %p130
    %p137 = scmp.eq.s32.totalorder %s11, 5
    %p138 = por %p136, %p137
    %p139 = scmp.ne.s32.totalorder %s131, %s134
    %p140 = scmp.eq.s32.totalorder %s11, 0
    %p141 = por %p139, %p140
    %p142 = scmp.ne.s32.totalorder %s131, %s134
    %p143 = scmp.eq.s32.totalorder %s16, 5
    %p144 = por %p142, %p143
    %p145 = scmp.ne.s32.totalorder %s134, %s135
    %p146 = scmp.eq.s32.totalorder %s16, 0
    %p147 = por %p145, %p146
    %p148 = scmp.ne.s32.totalorder %s134, %s135
    %p149 = scmp.eq.s32.totalorder %s17, 5
    %p150 = por %p148, %p149
    %p152 = scmp.ne.s32.totalorder %s135, %s151
    %p153 = scmp.eq.s32.totalorder %s17, 0
    %p154 = por %p152, %p153
    %p155 = scmp.le.s32.totalorder 1, %s11
    %p156 = scmp.lt.s32.totalorder %s11, 7
    %p157 = pnand %p155, %p156
    %p158 = pneg %p157
    // Predicated region
    $region9: #{conv_batch_norm.2} parent=5 // pred_check
      _
    $region10: #{conv_batch_norm.2} parent=5 // pred_check_branch
      %160 = sbr.rel (%p157) target = $region12
    $region11: #{conv_batch_norm.2} parent=5 // pred_region
      %s161 = ssub.s32 %s11, 1
      // Predicated region
      $region13: #{conv_batch_norm.2} parent=11 // pred_check
        %p162 = pneg %p70
      $region14: #{conv_batch_norm.2} parent=11 // pred_check_branch
        %164 = sbr.rel (%p162) target = $region16
      $region15: #{conv_batch_norm.2} parent=11 // pred_region
        _
      $region16: #{conv_batch_norm.2} parent=11 // pred_fallthru
        _
      // Predicated region
      $region17: #{conv_batch_norm.2} parent=11 // pred_check
        %p165 = pneg %p91
      $region18: #{conv_batch_norm.2} parent=11 // pred_check_branch
        %167 = sbr.rel (%p165) target = $region20
      $region19: #{conv_batch_norm.2} parent=11 // pred_region
        _
      $region20: #{conv_batch_norm.2} parent=11 // pred_fallthru
        _
    $region12: #{conv_batch_norm.2} parent=5 // pred_fallthru
      _
    %p168 = scmp.lt.s32.totalorder %s11, 6
    // Predicated region
    $region21: #{conv_batch_norm.2} parent=5 // pred_check
      %p169 = pneg %p168
    $region22: #{conv_batch_norm.2} parent=5 // pred_check_branch
      %171 = sbr.rel (%p169) target = $region24
    $region23: #{conv_batch_norm.2} parent=5 // pred_region
      // Predicated region
      $region25: #{conv_batch_norm.2} parent=23 // pred_check
        %p172 = pneg %p43
      $region26: #{conv_batch_norm.2} parent=23 // pred_check_branch
        %174 = sbr.rel (%p172) target = $region28
      $region27: #{conv_batch_norm.2} parent=23 // pred_region
        %p175 = scmp.lt.s32.totalorder %s18, 1
        %s176 = scalar_select %p175, %s18, 1
        %s177 = smul.addr %s176, 69
        %s178 = smul.addr %s177, 8
        %s179 = scalar_lea.vmem %s0, %s178
      $region28: #{conv_batch_norm.2} parent=23 // pred_fallthru
        _
    $region24: #{conv_batch_norm.2} parent=5 // pred_fallthru
      _
    %p180 = scmp.le.s32.totalorder 1, %s11
    %p181 = scmp.lt.s32.totalorder %s11, 7
    %p182 = pnand %p180, %p181
    %p183 = pneg %p182
    // Predicated region
    $region29: #{conv_batch_norm.2} parent=5 // pred_check
      _
    $region30: #{conv_batch_norm.2} parent=5 // pred_check_branch
      %185 = sbr.rel (%p182) target = $region32
    $region31: #{conv_batch_norm.2} parent=5 // pred_region
      %s186 = ssub.s32 %s11, 1
      %p187 = scmp.lt.s32.totalorder %s20, 1
      %s188 = scalar_select %p187, %s20, 1
      %s189 = smul.addr %s188, 69
      %s190 = smul.addr %s189, 8
      %s191 = scalar_lea.vmem %s0, %s190
      %p192 = pneg %p49
      %p193 = pneg %p46
      %p194 = pneg %p70
      %p195 = pneg %p67
      %p196 = pneg %p91
      %p197 = pneg %p88
      %p198 = pneg %p119
      %p199 = pneg %p116
      %s200 = smul.u32 7, %s21
      %p201 = scmp.lt.s32.totalorder %s20, 1
      %s202 = scalar_select %p201, %s20, 1
      %p203 = scmp.lt.s32.totalorder %s200, 20
      %s204 = scalar_select %p203, %s200, 20
      %s205 = smul.addr %s204, 2
      %s206 = smul.addr %s202, 42
      %s207 = sadd.s32 %s205, %s206
      %s208 = smul.addr %s207, 8
      %s209 = scalar_lea.vmem %s3, %s208
      %p210 = pneg %p147
      %p211 = pneg %p144
      %p212 = scmp.lt.s32.totalorder %s20, 1
      %s213 = scalar_select %p212, %s20, 1
      %p214 = scmp.lt.s32.totalorder %s21, 2
      %s215 = scalar_select %p214, %s21, 2
      %s216 = smul.addr %s213, 3
      %s217 = sadd.s32 %s215, %s216
      %s218 = smul.addr %s217, 2
      %s219 = scalar_lea.vmem %s4, %s218
      %p220 = scmp.lt.s32.totalorder %s20, 1
      %s221 = scalar_select %p220, %s20, 1
      %s222 = smul.addr %s221, 69
      %s223 = smul.addr %s222, 8
      %s224 = scalar_lea.vmem %s0, %s223
      %s225 = smul.u32 7, %s21
      %p226 = scmp.lt.s32.totalorder %s20, 1
      %s227 = scalar_select %p226, %s20, 1
      %p228 = scmp.lt.s32.totalorder %s225, 20
      %s229 = scalar_select %p228, %s225, 20
      %s230 = smul.addr %s229, 2
      %s231 = smul.addr %s227, 42
      %s232 = sadd.s32 %s230, %s231
      %s233 = smul.addr %s232, 8
      %s234 = scalar_lea.vmem %s3, %s233
      %s235 = smul.u32 7, %s21
      %p236 = scmp.lt.s32.totalorder %s20, 1
      %s237 = scalar_select %p236, %s20, 1
      %p238 = scmp.lt.s32.totalorder %s21, 2
      %s239 = scalar_select %p238, %s21, 2
      %s240 = smul.addr %s237, 3
      %s241 = sadd.s32 %s239, %s240
      %s242 = smul.addr %s241, 2
      %s243 = scalar_lea.vmem %s4, %s242
      %s244 = smul.u32 %s21, 7
      %s245 = smul.u32 %s244, 24
      %s246 = scalar_lea.vmem %s224, %s245
      %v247 = vld [vmem:[%s246] sm:$0xff]
      %v248 = vld [vmem:[%s246 + $0x8] sm:$0xff]
      %v249 = vld [vmem:[%s246 + $0x18] sm:$0xff]
      %v250 = vld [vmem:[%s246 + $0x20] sm:$0xff]
      %v251 = vld [vmem:[%s246 + $0x30] sm:$0xff]
      %v252 = vld [vmem:[%s246 + $0x38] sm:$0xff]
      %v253 = vld [vmem:[%s246 + $0x48] sm:$0xff]
      %v254 = vld [vmem:[%s246 + $0x50] sm:$0xff]
      %v255 = vld [vmem:[%s246 + $0x60] sm:$0xff]
      %v256 = vld [vmem:[%s246 + $0x68] sm:$0xff]
      %v257 = vld [vmem:[%s246 + $0x78] sm:$0xff]
      %v258 = vld [vmem:[%s246 + $0x80] sm:$0xff]
      %v259 = vld [vmem:[%s246 + $0x90] sm:$0xff]
      %v260 = vld [vmem:[%s246 + $0x98] sm:$0xff]
      %v261 = vld [vmem:[%s246 + $0x1] sm:$0xff]
      %v262 = vld [vmem:[%s246 + $0x9] sm:$0xff]
      %v263 = vld [vmem:[%s246 + $0x19] sm:$0xff]
      %v264 = vld [vmem:[%s246 + $0x21] sm:$0xff]
      %v265 = vld [vmem:[%s246 + $0x31] sm:$0xff]
      %v266 = vld [vmem:[%s246 + $0x39] sm:$0xff]
      %v267 = vld [vmem:[%s246 + $0x49] sm:$0xff]
      %v268 = vld [vmem:[%s246 + $0x51] sm:$0xff]
      %v269 = vld [vmem:[%s246 + $0x61] sm:$0xff]
      %v270 = vld [vmem:[%s246 + $0x69] sm:$0xff]
      %v271 = vld [vmem:[%s246 + $0x79] sm:$0xff]
      %v272 = vld [vmem:[%s246 + $0x81] sm:$0xff]
      %v273 = vld [vmem:[%s246 + $0x91] sm:$0xff]
      %v274 = vld [vmem:[%s246 + $0x99] sm:$0xff]
      %v275 = vld [vmem:[%s246 + $0x2] sm:$0xff]
      %v276 = vld [vmem:[%s246 + $0xa] sm:$0xff]
      %v277 = vld [vmem:[%s246 + $0x1a] sm:$0xff]
      %v278 = vld [vmem:[%s246 + $0x22] sm:$0xff]
      %v279 = vld [vmem:[%s246 + $0x32] sm:$0xff]
      %v280 = vld [vmem:[%s246 + $0x3a] sm:$0xff]
      %v281 = vld [vmem:[%s246 + $0x4a] sm:$0xff]
      %v282 = vld [vmem:[%s246 + $0x52] sm:$0xff]
      %v283 = vld [vmem:[%s246 + $0x62] sm:$0xff]
      %v284 = vld [vmem:[%s246 + $0x6a] sm:$0xff]
      %v285 = vld [vmem:[%s246 + $0x7a] sm:$0xff]
      %v286 = vld [vmem:[%s246 + $0x82] sm:$0xff]
      %v287 = vld [vmem:[%s246 + $0x92] sm:$0xff]
      %v288 = vld [vmem:[%s246 + $0x9a] sm:$0xff]
      %s289 = sadd.s32 %s244, 1
      %s290 = smul.u32 %s289, 24
      %s291 = scalar_lea.vmem %s224, %s290
      %v292 = vld [vmem:[%s291] sm:$0xff]
      %v293 = vld [vmem:[%s291 + $0x8] sm:$0xff]
      %v294 = vld [vmem:[%s291 + $0x18] sm:$0xff]
      %v295 = vld [vmem:[%s291 + $0x20] sm:$0xff]
      %v296 = vld [vmem:[%s291 + $0x30] sm:$0xff]
      %v297 = vld [vmem:[%s291 + $0x38] sm:$0xff]
      %v298 = vld [vmem:[%s291 + $0x48] sm:$0xff]
      %v299 = vld [vmem:[%s291 + $0x50] sm:$0xff]
      %v300 = vld [vmem:[%s291 + $0x60] sm:$0xff]
      %v301 = vld [vmem:[%s291 + $0x68] sm:$0xff]
      %v302 = vld [vmem:[%s291 + $0x78] sm:$0xff]
      %v303 = vld [vmem:[%s291 + $0x80] sm:$0xff]
      %v304 = vld [vmem:[%s291 + $0x90] sm:$0xff]
      %v305 = vld [vmem:[%s291 + $0x98] sm:$0xff]
      %v306 = vld [vmem:[%s291 + $0x1] sm:$0xff]
      %v307 = vld [vmem:[%s291 + $0x9] sm:$0xff]
      %v308 = vld [vmem:[%s291 + $0x19] sm:$0xff]
      %v309 = vld [vmem:[%s291 + $0x21] sm:$0xff]
      %v310 = vld [vmem:[%s291 + $0x31] sm:$0xff]
      %v311 = vld [vmem:[%s291 + $0x39] sm:$0xff]
      %v312 = vld [vmem:[%s291 + $0x49] sm:$0xff]
      %v313 = vld [vmem:[%s291 + $0x51] sm:$0xff]
      %v314 = vld [vmem:[%s291 + $0x61] sm:$0xff]
      %v315 = vld [vmem:[%s291 + $0x69] sm:$0xff]
      %v316 = vld [vmem:[%s291 + $0x79] sm:$0xff]
      %v317 = vld [vmem:[%s291 + $0x81] sm:$0xff]
      %v318 = vld [vmem:[%s291 + $0x91] sm:$0xff]
      %v319 = vld [vmem:[%s291 + $0x99] sm:$0xff]
      %v320 = vld [vmem:[%s291 + $0x2] sm:$0xff]
      %v321 = vld [vmem:[%s291 + $0xa] sm:$0xff]
      %v322 = vld [vmem:[%s291 + $0x1a] sm:$0xff]
      %v323 = vld [vmem:[%s291 + $0x22] sm:$0xff]
      %v324 = vld [vmem:[%s291 + $0x32] sm:$0xff]
      %v325 = vld [vmem:[%s291 + $0x3a] sm:$0xff]
      %v326 = vld [vmem:[%s291 + $0x4a] sm:$0xff]
      %v327 = vld [vmem:[%s291 + $0x52] sm:$0xff]
      %v328 = vld [vmem:[%s291 + $0x62] sm:$0xff]
      %v329 = vld [vmem:[%s291 + $0x6a] sm:$0xff]
      %v330 = vld [vmem:[%s291 + $0x7a] sm:$0xff]
      %v331 = vld [vmem:[%s291 + $0x82] sm:$0xff]
      %v332 = vld [vmem:[%s291 + $0x92] sm:$0xff]
      %v333 = vld [vmem:[%s291 + $0x9a] sm:$0xff]
      %s334 = sadd.s32 %s244, 2
      %s335 = smul.u32 %s334, 24
      %s336 = scalar_lea.vmem %s224, %s335
      %v337 = vld [vmem:[%s336] sm:$0xff]
      %v338 = vld [vmem:[%s336 + $0x8] sm:$0xff]
      %v339 = vld [vmem:[%s336 + $0x18] sm:$0xff]
      %v340 = vld [vmem:[%s336 + $0x20] sm:$0xff]
      %v341 = vld [vmem:[%s336 + $0x30] sm:$0xff]
      %v342 = vld [vmem:[%s336 + $0x38] sm:$0xff]
      %v343 = vld [vmem:[%s336 + $0x48] sm:$0xff]
      %v344 = vld [vmem:[%s336 + $0x50] sm:$0xff]
      %v345 = vld [vmem:[%s336 + $0x60] sm:$0xff]
      %v346 = vld [vmem:[%s336 + $0x68] sm:$0xff]
      %v347 = vld [vmem:[%s336 + $0x78] sm:$0xff]
      %v348 = vld [vmem:[%s336 + $0x80] sm:$0xff]
      %v349 = vld [vmem:[%s336 + $0x90] sm:$0xff]
      %v350 = vld [vmem:[%s336 + $0x98] sm:$0xff]
      %v351 = vld [vmem:[%s336 + $0x1] sm:$0xff]
      %v352 = vld [vmem:[%s336 + $0x9] sm:$0xff]
      %v353 = vld [vmem:[%s336 + $0x19] sm:$0xff]
      %v354 = vld [vmem:[%s336 + $0x21] sm:$0xff]
      %v355 = vld [vmem:[%s336 + $0x31] sm:$0xff]
      %v356 = vld [vmem:[%s336 + $0x39] sm:$0xff]
      %v357 = vld [vmem:[%s336 + $0x49] sm:$0xff]
      %v358 = vld [vmem:[%s336 + $0x51] sm:$0xff]
      %v359 = vld [vmem:[%s336 + $0x61] sm:$0xff]
      %v360 = vld [vmem:[%s336 + $0x69] sm:$0xff]
      %v361 = vld [vmem:[%s336 + $0x79] sm:$0xff]
      %v362 = vld [vmem:[%s336 + $0x81] sm:$0xff]
      %v363 = vld [vmem:[%s336 + $0x91] sm:$0xff]
      %v364 = vld [vmem:[%s336 + $0x99] sm:$0xff]
      %v365 = vld [vmem:[%s336 + $0x2] sm:$0xff]
      %v366 = vld [vmem:[%s336 + $0xa] sm:$0xff]
      %v367 = vld [vmem:[%s336 + $0x1a] sm:$0xff]
      %v368 = vld [vmem:[%s336 + $0x22] sm:$0xff]
      %v369 = vld [vmem:[%s336 + $0x32] sm:$0xff]
      %v370 = vld [vmem:[%s336 + $0x3a] sm:$0xff]
      %v371 = vld [vmem:[%s336 + $0x4a] sm:$0xff]
      %v372 = vld [vmem:[%s336 + $0x52] sm:$0xff]
      %v373 = vld [vmem:[%s336 + $0x62] sm:$0xff]
      %v374 = vld [vmem:[%s336 + $0x6a] sm:$0xff]
      %v375 = vld [vmem:[%s336 + $0x7a] sm:$0xff]
      %v376 = vld [vmem:[%s336 + $0x82] sm:$0xff]
      %v377 = vld [vmem:[%s336 + $0x92] sm:$0xff]
      %v378 = vld [vmem:[%s336 + $0x9a] sm:$0xff]
      %393 = vrot.lane.b32.xlu0 %v261, 4
      %v394 = vpop.permute.xlu0 %393
      %395 = vrot.lane.b32.xlu0 %v262, 4
      %v396 = vpop.permute.xlu0 %395
      %397 = vrot.lane.b32.xlu0 %v263, 4
      %v398 = vpop.permute.xlu0 %397
      %399 = vrot.lane.b32.xlu0 %v264, 4
      %v400 = vpop.permute.xlu0 %399
      %401 = vrot.lane.b32.xlu0 %v265, 4
      %v402 = vpop.permute.xlu0 %401
      %403 = vrot.lane.b32.xlu0 %v266, 4
      %v404 = vpop.permute.xlu0 %403
      %405 = vrot.lane.b32.xlu0 %v267, 4
      %v406 = vpop.permute.xlu0 %405
      %407 = vrot.lane.b32.xlu0 %v268, 4
      %v408 = vpop.permute.xlu0 %407
      %409 = vrot.lane.b32.xlu0 %v269, 4
      %v410 = vpop.permute.xlu0 %409
      %411 = vrot.lane.b32.xlu0 %v270, 4
      %v412 = vpop.permute.xlu0 %411
      %413 = vrot.lane.b32.xlu0 %v271, 4
      %v414 = vpop.permute.xlu0 %413
      %415 = vrot.lane.b32.xlu0 %v272, 4
      %v416 = vpop.permute.xlu0 %415
      %417 = vrot.lane.b32.xlu0 %v273, 4
      %v418 = vpop.permute.xlu0 %417
      %419 = vrot.lane.b32.xlu0 %v274, 4
      %v420 = vpop.permute.xlu0 %419
      %449 = vrot.lane.b32.xlu0 %v275, 8
      %v450 = vpop.permute.xlu0 %449
      %451 = vrot.lane.b32.xlu0 %v276, 8
      %v452 = vpop.permute.xlu0 %451
      %453 = vrot.lane.b32.xlu0 %v277, 8
      %v454 = vpop.permute.xlu0 %453
      %455 = vrot.lane.b32.xlu0 %v278, 8
      %v456 = vpop.permute.xlu0 %455
      %457 = vrot.lane.b32.xlu0 %v279, 8
      %v458 = vpop.permute.xlu0 %457
      %459 = vrot.lane.b32.xlu0 %v280, 8
      %v460 = vpop.permute.xlu0 %459
      %461 = vrot.lane.b32.xlu0 %v281, 8
      %v462 = vpop.permute.xlu0 %461
      %463 = vrot.lane.b32.xlu0 %v282, 8
      %v464 = vpop.permute.xlu0 %463
      %465 = vrot.lane.b32.xlu0 %v283, 8
      %v466 = vpop.permute.xlu0 %465
      %467 = vrot.lane.b32.xlu0 %v284, 8
      %v468 = vpop.permute.xlu0 %467
      %469 = vrot.lane.b32.xlu0 %v285, 8
      %v470 = vpop.permute.xlu0 %469
      %471 = vrot.lane.b32.xlu0 %v286, 8
      %v472 = vpop.permute.xlu0 %471
      %473 = vrot.lane.b32.xlu0 %v287, 8
      %v474 = vpop.permute.xlu0 %473
      %475 = vrot.lane.b32.xlu0 %v288, 8
      %v476 = vpop.permute.xlu0 %475
      %505 = vrot.lane.b32.xlu0 %v292, 12
      %v506 = vpop.permute.xlu0 %505
      %507 = vrot.lane.b32.xlu0 %v293, 12
      %v508 = vpop.permute.xlu0 %507
      %509 = vrot.lane.b32.xlu0 %v294, 12
      %v510 = vpop.permute.xlu0 %509
      %511 = vrot.lane.b32.xlu0 %v295, 12
      %v512 = vpop.permute.xlu0 %511
      %513 = vrot.lane.b32.xlu0 %v296, 12
      %v514 = vpop.permute.xlu0 %513
      %515 = vrot.lane.b32.xlu0 %v297, 12
      %v516 = vpop.permute.xlu0 %515
      %517 = vrot.lane.b32.xlu0 %v298, 12
      %v518 = vpop.permute.xlu0 %517
      %519 = vrot.lane.b32.xlu0 %v299, 12
      %v520 = vpop.permute.xlu0 %519
      %521 = vrot.lane.b32.xlu0 %v300, 12
      %v522 = vpop.permute.xlu0 %521
      %523 = vrot.lane.b32.xlu0 %v301, 12
      %v524 = vpop.permute.xlu0 %523
      %525 = vrot.lane.b32.xlu0 %v302, 12
      %v526 = vpop.permute.xlu0 %525
      %527 = vrot.lane.b32.xlu0 %v303, 12
      %v528 = vpop.permute.xlu0 %527
      %529 = vrot.lane.b32.xlu0 %v304, 12
      %v530 = vpop.permute.xlu0 %529
      %531 = vrot.lane.b32.xlu0 %v305, 12
      %v532 = vpop.permute.xlu0 %531
      %561 = vrot.lane.b32.xlu0 %v306, 16
      %v562 = vpop.permute.xlu0 %561
      %563 = vrot.lane.b32.xlu0 %v307, 16
      %v564 = vpop.permute.xlu0 %563
      %565 = vrot.lane.b32.xlu0 %v308, 16
      %v566 = vpop.permute.xlu0 %565
      %567 = vrot.lane.b32.xlu0 %v309, 16
      %v568 = vpop.permute.xlu0 %567
      %569 = vrot.lane.b32.xlu0 %v310, 16
      %v570 = vpop.permute.xlu0 %569
      %571 = vrot.lane.b32.xlu0 %v311, 16
      %v572 = vpop.permute.xlu0 %571
      %573 = vrot.lane.b32.xlu0 %v312, 16
      %v574 = vpop.permute.xlu0 %573
      %575 = vrot.lane.b32.xlu0 %v313, 16
      %v576 = vpop.permute.xlu0 %575
      %577 = vrot.lane.b32.xlu0 %v314, 16
      %v578 = vpop.permute.xlu0 %577
      %579 = vrot.lane.b32.xlu0 %v315, 16
      %v580 = vpop.permute.xlu0 %579
      %581 = vrot.lane.b32.xlu0 %v316, 16
      %v582 = vpop.permute.xlu0 %581
      %583 = vrot.lane.b32.xlu0 %v317, 16
      %v584 = vpop.permute.xlu0 %583
      %585 = vrot.lane.b32.xlu0 %v318, 16
      %v586 = vpop.permute.xlu0 %585
      %587 = vrot.lane.b32.xlu0 %v319, 16
      %v588 = vpop.permute.xlu0 %587
      %617 = vrot.lane.b32.xlu0 %v320, 20
      %v618 = vpop.permute.xlu0 %617
      %619 = vrot.lane.b32.xlu0 %v321, 20
      %v620 = vpop.permute.xlu0 %619
      %621 = vrot.lane.b32.xlu0 %v322, 20
      %v622 = vpop.permute.xlu0 %621
      %623 = vrot.lane.b32.xlu0 %v323, 20
      %v624 = vpop.permute.xlu0 %623
      %625 = vrot.lane.b32.xlu0 %v324, 20
      %v626 = vpop.permute.xlu0 %625
      %627 = vrot.lane.b32.xlu0 %v325, 20
      %v628 = vpop.permute.xlu0 %627
      %629 = vrot.lane.b32.xlu0 %v326, 20
      %v630 = vpop.permute.xlu0 %629
      %631 = vrot.lane.b32.xlu0 %v327, 20
      %v632 = vpop.permute.xlu0 %631
      %633 = vrot.lane.b32.xlu0 %v328, 20
      %v634 = vpop.permute.xlu0 %633
      %635 = vrot.lane.b32.xlu0 %v329, 20
      %v636 = vpop.permute.xlu0 %635
      %637 = vrot.lane.b32.xlu0 %v330, 20
      %v638 = vpop.permute.xlu0 %637
      %639 = vrot.lane.b32.xlu0 %v331, 20
      %v640 = vpop.permute.xlu0 %639
      %641 = vrot.lane.b32.xlu0 %v332, 20
      %v642 = vpop.permute.xlu0 %641
      %643 = vrot.lane.b32.xlu0 %v333, 20
      %v644 = vpop.permute.xlu0 %643
      %673 = vrot.lane.b32.xlu0 %v337, 24
      %v674 = vpop.permute.xlu0 %673
      %675 = vrot.lane.b32.xlu0 %v338, 24
      %v676 = vpop.permute.xlu0 %675
      %677 = vrot.lane.b32.xlu0 %v339, 24
      %v678 = vpop.permute.xlu0 %677
      %679 = vrot.lane.b32.xlu0 %v340, 24
      %v680 = vpop.permute.xlu0 %679
      %681 = vrot.lane.b32.xlu0 %v341, 24
      %v682 = vpop.permute.xlu0 %681
      %683 = vrot.lane.b32.xlu0 %v342, 24
      %v684 = vpop.permute.xlu0 %683
      %685 = vrot.lane.b32.xlu0 %v343, 24
      %v686 = vpop.permute.xlu0 %685
      %687 = vrot.lane.b32.xlu0 %v344, 24
      %v688 = vpop.permute.xlu0 %687
      %689 = vrot.lane.b32.xlu0 %v345, 24
      %v690 = vpop.permute.xlu0 %689
      %691 = vrot.lane.b32.xlu0 %v346, 24
      %v692 = vpop.permute.xlu0 %691
      %693 = vrot.lane.b32.xlu0 %v347, 24
      %v694 = vpop.permute.xlu0 %693
      %695 = vrot.lane.b32.xlu0 %v348, 24
      %v696 = vpop.permute.xlu0 %695
      %697 = vrot.lane.b32.xlu0 %v349, 24
      %v698 = vpop.permute.xlu0 %697
      %699 = vrot.lane.b32.xlu0 %v350, 24
      %v700 = vpop.permute.xlu0 %699
      %729 = vrot.lane.b32.xlu0 %v351, 28
      %v730 = vpop.permute.xlu0 %729
      %731 = vrot.lane.b32.xlu0 %v352, 28
      %v732 = vpop.permute.xlu0 %731
      %733 = vrot.lane.b32.xlu0 %v353, 28
      %v734 = vpop.permute.xlu0 %733
      %735 = vrot.lane.b32.xlu0 %v354, 28
      %v736 = vpop.permute.xlu0 %735
      %737 = vrot.lane.b32.xlu0 %v355, 28
      %v738 = vpop.permute.xlu0 %737
      %739 = vrot.lane.b32.xlu0 %v356, 28
      %v740 = vpop.permute.xlu0 %739
      %741 = vrot.lane.b32.xlu0 %v357, 28
      %v742 = vpop.permute.xlu0 %741
      %743 = vrot.lane.b32.xlu0 %v358, 28
      %v744 = vpop.permute.xlu0 %743
      %745 = vrot.lane.b32.xlu0 %v359, 28
      %v746 = vpop.permute.xlu0 %745
      %747 = vrot.lane.b32.xlu0 %v360, 28
      %v748 = vpop.permute.xlu0 %747
      %749 = vrot.lane.b32.xlu0 %v361, 28
      %v750 = vpop.permute.xlu0 %749
      %751 = vrot.lane.b32.xlu0 %v362, 28
      %v752 = vpop.permute.xlu0 %751
      %753 = vrot.lane.b32.xlu0 %v363, 28
      %v754 = vpop.permute.xlu0 %753
      %755 = vrot.lane.b32.xlu0 %v364, 28
      %v756 = vpop.permute.xlu0 %755
      %785 = vrot.lane.b32.xlu0 %v365, 32
      %v786 = vpop.permute.xlu0 %785
      %787 = vrot.lane.b32.xlu0 %v366, 32
      %v788 = vpop.permute.xlu0 %787
      %789 = vrot.lane.b32.xlu0 %v367, 32
      %v790 = vpop.permute.xlu0 %789
      %791 = vrot.lane.b32.xlu0 %v368, 32
      %v792 = vpop.permute.xlu0 %791
      %793 = vrot.lane.b32.xlu0 %v369, 32
      %v794 = vpop.permute.xlu0 %793
      %795 = vrot.lane.b32.xlu0 %v370, 32
      %v796 = vpop.permute.xlu0 %795
      %797 = vrot.lane.b32.xlu0 %v371, 32
      %v798 = vpop.permute.xlu0 %797
      %799 = vrot.lane.b32.xlu0 %v372, 32
      %v800 = vpop.permute.xlu0 %799
      %801 = vrot.lane.b32.xlu0 %v373, 32
      %v802 = vpop.permute.xlu0 %801
      %803 = vrot.lane.b32.xlu0 %v374, 32
      %v804 = vpop.permute.xlu0 %803
      %805 = vrot.lane.b32.xlu0 %v375, 32
      %v806 = vpop.permute.xlu0 %805
      %807 = vrot.lane.b32.xlu0 %v376, 32
      %v808 = vpop.permute.xlu0 %807
      %809 = vrot.lane.b32.xlu0 %v377, 32
      %v810 = vpop.permute.xlu0 %809
      %811 = vrot.lane.b32.xlu0 %v378, 32
      %v812 = vpop.permute.xlu0 %811
      %vm827 = vcmask 31744
      %v828 = vsel %vm827, %v247, %v394
      %v829 = vsel %vm827, %v248, %v396
      %v830 = vsel %vm827, %v249, %v398
      %v831 = vsel %vm827, %v250, %v400
      %v832 = vsel %vm827, %v251, %v402
      %v833 = vsel %vm827, %v252, %v404
      %v834 = vsel %vm827, %v253, %v406
      %v835 = vsel %vm827, %v254, %v408
      %v836 = vsel %vm827, %v255, %v410
      %v837 = vsel %vm827, %v256, %v412
      %v838 = vsel %vm827, %v257, %v414
      %v839 = vsel %vm827, %v258, %v416
      %v840 = vsel %vm827, %v259, %v418
      %v841 = vsel %vm827, %v260, %v420
      %vm842 = vcmask 64512
      %v843 = vsel %vm842, %v828, %v450
      %v844 = vsel %vm842, %v829, %v452
      %v845 = vsel %vm842, %v830, %v454
      %v846 = vsel %vm842, %v831, %v456
      %v847 = vsel %vm842, %v832, %v458
      %v848 = vsel %vm842, %v833, %v460
      %v849 = vsel %vm842, %v834, %v462
      %v850 = vsel %vm842, %v835, %v464
      %v851 = vsel %vm842, %v836, %v466
      %v852 = vsel %vm842, %v837, %v468
      %v853 = vsel %vm842, %v838, %v470
      %v854 = vsel %vm842, %v839, %v472
      %v855 = vsel %vm842, %v840, %v474
      %v856 = vsel %vm842, %v841, %v476
      %vm857 = vcmask 97280
      %v858 = vsel %vm857, %v843, %v506
      %v859 = vsel %vm857, %v844, %v508
      %v860 = vsel %vm857, %v845, %v510
      %v861 = vsel %vm857, %v846, %v512
      %v862 = vsel %vm857, %v847, %v514
      %v863 = vsel %vm857, %v848, %v516
      %v864 = vsel %vm857, %v849, %v518
      %v865 = vsel %vm857, %v850, %v520
      %v866 = vsel %vm857, %v851, %v522
      %v867 = vsel %vm857, %v852, %v524
      %v868 = vsel %vm857, %v853, %v526
      %v869 = vsel %vm857, %v854, %v528
      %v870 = vsel %vm857, %v855, %v530
      %v871 = vsel %vm857, %v856, %v532
      %vm872 = vcmask 130048
      %v873 = vsel %vm872, %v858, %v562
      %v874 = vsel %vm872, %v859, %v564
      %v875 = vsel %vm872, %v860, %v566
      %v876 = vsel %vm872, %v861, %v568
      %v877 = vsel %vm872, %v862, %v570
      %v878 = vsel %vm872, %v863, %v572
      %v879 = vsel %vm872, %v864, %v574
      %v880 = vsel %vm872, %v865, %v576
      %v881 = vsel %vm872, %v866, %v578
      %v882 = vsel %vm872, %v867, %v580
      %v883 = vsel %vm872, %v868, %v582
      %v884 = vsel %vm872, %v869, %v584
      %v885 = vsel %vm872, %v870, %v586
      %v886 = vsel %vm872, %v871, %v588
      %vm887 = vcmask 162816
      %v888 = vsel %vm887, %v873, %v618
      %v889 = vsel %vm887, %v874, %v620
      %v890 = vsel %vm887, %v875, %v622
      %v891 = vsel %vm887, %v876, %v624
      %v892 = vsel %vm887, %v877, %v626
      %v893 = vsel %vm887, %v878, %v628
      %v894 = vsel %vm887, %v879, %v630
      %v895 = vsel %vm887, %v880, %v632
      %v896 = vsel %vm887, %v881, %v634
      %v897 = vsel %vm887, %v882, %v636
      %v898 = vsel %vm887, %v883, %v638
      %v899 = vsel %vm887, %v884, %v640
      %v900 = vsel %vm887, %v885, %v642
      %v901 = vsel %vm887, %v886, %v644
      %vm902 = vcmask 195584
      %v903 = vsel %vm902, %v888, %v674
      %v904 = vsel %vm902, %v889, %v676
      %v905 = vsel %vm902, %v890, %v678
      %v906 = vsel %vm902, %v891, %v680
      %v907 = vsel %vm902, %v892, %v682
      %v908 = vsel %vm902, %v893, %v684
      %v909 = vsel %vm902, %v894, %v686
      %v910 = vsel %vm902, %v895, %v688
      %v911 = vsel %vm902, %v896, %v690
      %v912 = vsel %vm902, %v897, %v692
      %v913 = vsel %vm902, %v898, %v694
      %v914 = vsel %vm902, %v899, %v696
      %v915 = vsel %vm902, %v900, %v698
      %v916 = vsel %vm902, %v901, %v700
      %vm917 = vcmask 228352
      %v918 = vsel %vm917, %v903, %v730
      %v919 = vsel %vm917, %v904, %v732
      %v920 = vsel %vm917, %v905, %v734
      %v921 = vsel %vm917, %v906, %v736
      %v922 = vsel %vm917, %v907, %v738
      %v923 = vsel %vm917, %v908, %v740
      %v924 = vsel %vm917, %v909, %v742
      %v925 = vsel %vm917, %v910, %v744
      %v926 = vsel %vm917, %v911, %v746
      %v927 = vsel %vm917, %v912, %v748
      %v928 = vsel %vm917, %v913, %v750
      %v929 = vsel %vm917, %v914, %v752
      %v930 = vsel %vm917, %v915, %v754
      %v931 = vsel %vm917, %v916, %v756
      %vm932 = vcmask 261120
      %v933 = vsel %vm932, %v918, %v786
      %v934 = vsel %vm932, %v919, %v788
      %v935 = vsel %vm932, %v920, %v790
      %v936 = vsel %vm932, %v921, %v792
      %v937 = vsel %vm932, %v922, %v794
      %v938 = vsel %vm932, %v923, %v796
      %v939 = vsel %vm932, %v924, %v798
      %v940 = vsel %vm932, %v925, %v800
      %v941 = vsel %vm932, %v926, %v802
      %v942 = vsel %vm932, %v927, %v804
      %v943 = vsel %vm932, %v928, %v806
      %v944 = vsel %vm932, %v929, %v808
      %v945 = vsel %vm932, %v930, %v810
      %v946 = vsel %vm932, %v931, %v812
      %v947 = vld [vmem:[%s1] sm:$0xff]
      %v948 = vld [vmem:[%s1 + $0x8] sm:$0xff]
      %v949 = vld [vmem:[%s1 + $0x10] sm:$0xff]
      %v950 = vld [vmem:[%s1 + $0x18] sm:$0xff]
      %v951 = vld [vmem:[%s1 + $0x20] sm:$0xf]
      %v952 = vld [vmem:[%s2] sm:$0x1]
      %v954 = vlaneseq
      %v955 = vshrl.u32 %v954, 7
      %v956 = vsub.s32 0, %v955
      %v957 = vrot.slane %v952, %v956
      %vm959 = vcmask 293888
      %v961 = vsel %vm959, %v933, 0
      %v964 = vsel %vm959, %v934, 0
      %v967 = vsel %vm959, %v935, 0
      %v970 = vsel %vm959, %v936, 0
      %v973 = vsel %vm959, %v937, 0
      %v976 = vsel %vm959, %v938, 0
      %v979 = vsel %vm959, %v939, 0
      %v982 = vsel %vm959, %v940, 0
      %v985 = vsel %vm959, %v941, 0
      %v988 = vsel %vm959, %v942, 0
      %v991 = vsel %vm959, %v943, 0
      %v994 = vsel %vm959, %v944, 0
      %v997 = vsel %vm959, %v945, 0
      %v1000 = vsel %vm959, %v946, 0
      %vm1002 = vcmask 1043456
      %v1004 = vsel %vm1002, %v951, 0
      %1006 = vmatprep.subr.mxu0 0.0
      %1007 = vmatpush1.msra.mxu0 %v947
      %1008 = vmatprep.subr.mxu0 0.0
      %1009 = vmatpush1.msra.mxu0 %v948
      %1010 = vmatprep.subr.mxu0 0.0
      %1011 = vmatpush1.msra.mxu0 %v949
      %1012 = vmatprep.subr.mxu0 0.0
      %1013 = vmatpush1.msra.mxu0 %v950
      %1014 = vmatprep.subr.mxu0 0.0
      %1015 = vmatpush1.msra.mxu0 %v1004
      %1016 = vmatprep.subr.mxu0 0.0
      %1017 = vmatpush1.msra.mxu0 0.0
      %1018 = vmatprep.subr.mxu0 0.0
      %1019 = vmatpush1.msra.mxu0 0.0
      %1020 = vmatprep.subr.mxu0 0.0
      %1021 = vmatpush1.msra.mxu0 0.0
      %1022 = vmatprep.subr.mxu0 0.0
      %1023 = vmatpush1.msra.mxu0 0.0
      %1024 = vmatprep.subr.mxu0 0.0
      %1025 = vmatpush1.msra.mxu0 0.0
      %1026 = vmatprep.subr.mxu0 0.0
      %1027 = vmatpush1.msra.mxu0 0.0
      %1028 = vmatprep.subr.mxu0 0.0
      %1029 = vmatpush1.msra.mxu0 0.0
      %1030 = vmatprep.subr.mxu0 0.0
      %1031 = vmatpush1.msra.mxu0 0.0
      %1032 = vmatprep.subr.mxu0 0.0
      %1033 = vmatpush1.msra.mxu0 0.0
      %1034 = vmatprep.subr.mxu0 0.0
      %1035 = vmatpush1.msra.mxu0 0.0
      %1036 = vmatprep.subr.mxu0 0.0
      %1037 = vmatpush1.msra.mxu0 0.0
      %1038 = vmatprep.subr.mxu0 0.0
      %1039 = vmatpush1.msra.mxu0 0.0
      %1040 = vmatprep.subr.mxu0 0.0
      %1041 = vmatpush1.msra.mxu0 0.0
      %1042 = vmatprep.subr.mxu0 0.0
      %1043 = vmatpush1.msra.mxu0 0.0
      %1044 = vmatprep.subr.mxu0 0.0
      %1045 = vmatpush1.msra.mxu0 0.0
      %1046 = vmatprep.subr.mxu0 0.0
      %1047 = vmatpush1.msra.mxu0 0.0
      %1048 = vmatprep.subr.mxu0 0.0
      %1049 = vmatpush1.msra.mxu0 0.0
      %1050 = vmatprep.subr.mxu0 0.0
      %1051 = vmatpush1.msra.mxu0 0.0
      %1052 = vmatprep.subr.mxu0 0.0
      %1053 = vmatpush1.msra.mxu0 0.0
      %1054 = vmatprep.subr.mxu0 0.0
      %1055 = vmatpush1.msra.mxu0 0.0
      %1056 = vmatprep.subr.mxu0 0.0
      %1057 = vmatpush1.msra.mxu0 0.0
      %1058 = vmatprep.subr.mxu0 0.0
      %1059 = vmatpush1.msra.mxu0 0.0
      %1060 = vmatprep.subr.mxu0 0.0
      %1061 = vmatpush1.msra.mxu0 0.0
      %1062 = vmatprep.subr.mxu0 0.0
      %1063 = vmatpush1.msra.mxu0 0.0
      %1064 = vmatprep.subr.mxu0 0.0
      %1065 = vmatpush1.msra.mxu0 0.0
      %1066 = vmatprep.subr.mxu0 0.0
      %1067 = vmatpush1.msra.mxu0 0.0
      %1068 = vmatprep.subr.mxu0 0.0
      %1069 = vmatpush1.msra.mxu0 0.0
      %1070 = vmatprep.mubr.f32.mxu0 0.0
      %1071 = vmatmul.mubr.f32.gmra.mrb[0].mxu0 %v961
      %v1072 = vpop.f32.mrb[0].mxu0
      %v1073 = vadd.f32 %v957, %v1072
      %v1074 = vpop.f32.mrb[0].mxu0
      %1075 = vmatprep.mubr.f32.mxu0 0.0
      %1076 = vmatmul.mubr.f32.gmra.mrb[0].mxu0 %v964
      %v1077 = vpop.f32.mrb[0].mxu0
      %v1078 = vadd.f32 %v957, %v1077
      %v1079 = vpop.f32.mrb[0].mxu0
      %1080 = vmatprep.mubr.f32.mxu0 0.0
      %1081 = vmatmul.mubr.f32.gmra.mrb[0].mxu0 %v967
      %v1082 = vpop.f32.mrb[0].mxu0
      %v1083 = vadd.f32 %v957, %v1082
      %v1084 = vpop.f32.mrb[0].mxu0
      %1085 = vmatprep.mubr.f32.mxu0 0.0
      %1086 = vmatmul.mubr.f32.gmra.mrb[0].mxu0 %v970
      %v1087 = vpop.f32.mrb[0].mxu0
      %v1088 = vadd.f32 %v957, %v1087
      %v1089 = vpop.f32.mrb[0].mxu0
      %1090 = vmatprep.mubr.f32.mxu0 0.0
      %1091 = vmatmul.mubr.f32.gmra.mrb[0].mxu0 %v973
      %v1092 = vpop.f32.mrb[0].mxu0
      %v1093 = vadd.f32 %v957, %v1092
      %v1094 = vpop.f32.mrb[0].mxu0
      %1095 = vmatprep.mubr.f32.mxu0 0.0
      %1096 = vmatmul.mubr.f32.gmra.mrb[0].mxu0 %v976
      %v1097 = vpop.f32.mrb[0].mxu0
      %v1098 = vadd.f32 %v957, %v1097
      %v1099 = vpop.f32.mrb[0].mxu0
      %1100 = vmatprep.mubr.f32.mxu0 0.0
      %1101 = vmatmul.mubr.f32.gmra.mrb[0].mxu0 %v979
      %v1102 = vpop.f32.mrb[0].mxu0
      %v1103 = vadd.f32 %v957, %v1102
      %v1104 = vpop.f32.mrb[0].mxu0
      %1105 = vmatprep.mubr.f32.mxu0 0.0
      %1106 = vmatmul.mubr.f32.gmra.mrb[0].mxu0 %v982
      %v1107 = vpop.f32.mrb[0].mxu0
      %v1108 = vadd.f32 %v957, %v1107
      %v1109 = vpop.f32.mrb[0].mxu0
      %1110 = vmatprep.mubr.f32.mxu0 0.0
      %1111 = vmatmul.mubr.f32.gmra.mrb[0].mxu0 %v985
      %v1112 = vpop.f32.mrb[0].mxu0
      %v1113 = vadd.f32 %v957, %v1112
      %v1114 = vpop.f32.mrb[0].mxu0
      %1115 = vmatprep.mubr.f32.mxu0 0.0
      %1116 = vmatmul.mubr.f32.gmra.mrb[0].mxu0 %v988
      %v1117 = vpop.f32.mrb[0].mxu0
      %v1118 = vadd.f32 %v957, %v1117
      %v1119 = vpop.f32.mrb[0].mxu0
      %1120 = vmatprep.mubr.f32.mxu0 0.0
      %1121 = vmatmul.mubr.f32.gmra.mrb[0].mxu0 %v991
      %v1122 = vpop.f32.mrb[0].mxu0
      %v1123 = vadd.f32 %v957, %v1122
      %v1124 = vpop.f32.mrb[0].mxu0
      %1125 = vmatprep.mubr.f32.mxu0 0.0
      %1126 = vmatmul.mubr.f32.gmra.mrb[0].mxu0 %v994
      %v1127 = vpop.f32.mrb[0].mxu0
      %v1128 = vadd.f32 %v957, %v1127
      %v1129 = vpop.f32.mrb[0].mxu0
      %1130 = vmatprep.mubr.f32.mxu0 0.0
      %1131 = vmatmul.mubr.f32.gmra.mrb[0].mxu0 %v997
      %v1132 = vpop.f32.mrb[0].mxu0
      %v1133 = vadd.f32 %v957, %v1132
      %v1134 = vpop.f32.mrb[0].mxu0
      %1135 = vmatprep.mubr.f32.mxu0 0.0
      %1136 = vmatmul.mubr.f32.gmra.mrb[0].mxu0 %v1000
      %v1137 = vpop.f32.mrb[0].mxu0
      %v1138 = vadd.f32 %v957, %v1137
      %v1139 = vpop.f32.mrb[0].mxu0
      %1140 = vdwg.mxu0
      %1141 = vst.msk [vmem:[%s234] sm:$0xff] %vm842, %v1073
      %1142 = vst.msk [vmem:[%s234 + $0x8] sm:$0xff] %vm842, %v1078
      %1143 = vst.msk [vmem:[%s234 + $0x10] sm:$0xff] %vm842, %v1083
      %1144 = vst.msk [vmem:[%s234 + $0x18] sm:$0xff] %vm842, %v1088
      %1145 = vst.msk [vmem:[%s234 + $0x20] sm:$0xff] %vm842, %v1093
      %1146 = vst.msk [vmem:[%s234 + $0x28] sm:$0xff] %vm842, %v1098
      %1147 = vst.msk [vmem:[%s234 + $0x30] sm:$0xff] %vm842, %v1103
      %1148 = vst.msk [vmem:[%s234 + $0x38] sm:$0xff] %vm842, %v1108
      %1149 = vst.msk [vmem:[%s234 + $0x40] sm:$0xff] %vm842, %v1113
      %1150 = vst.msk [vmem:[%s234 + $0x48] sm:$0xff] %vm842, %v1118
      %1151 = vst.msk [vmem:[%s234 + $0x50] sm:$0xff] %vm842, %v1123
      %1152 = vst.msk [vmem:[%s234 + $0x58] sm:$0xff] %vm842, %v1128
      %1153 = vst.msk [vmem:[%s234 + $0x60] sm:$0xff] %vm842, %v1133
      %1154 = vst.msk [vmem:[%s234 + $0x68] sm:$0xff] %vm842, %v1138
      %s1155 = ssub.s32 16, %s244
      %s1156 = smul.u32 %s1155, 16
      %v1157 = vlaneseq
      %v1158 = vshrl.u32 %v1157, 7
      %v1159 = vadd.s32 %v1158, 8
      %v1160 = vadd.s32 %v1158, 16
      %v1161 = vadd.s32 %v1158, 24
      %v1162 = vadd.s32 %v1158, 32
      %v1163 = vadd.s32 %v1158, 40
      %v1164 = vadd.s32 %v1158, 48
      %v1165 = vadd.s32 %v1158, 56
      %v1166 = vadd.s32 %v1158, 64
      %v1167 = vadd.s32 %v1158, 72
      %v1168 = vadd.s32 %v1158, 80
      %v1169 = vadd.s32 %v1158, 88
      %v1170 = vadd.s32 %v1158, 96
      %v1171 = vadd.s32 %v1158, 104
      %v1172 = vstv %s1156
      %vm1173 = vcmp.lt.s32.totalorder %v1158, %v1172
      %vm1174 = vcmp.lt.s32.totalorder %v1159, %v1172
      %vm1175 = vcmp.lt.s32.totalorder %v1160, %v1172
      %vm1176 = vcmp.lt.s32.totalorder %v1161, %v1172
      %vm1177 = vcmp.lt.s32.totalorder %v1162, %v1172
      %vm1178 = vcmp.lt.s32.totalorder %v1163, %v1172
      %vm1179 = vcmp.lt.s32.totalorder %v1164, %v1172
      %vm1180 = vcmp.lt.s32.totalorder %v1165, %v1172
      %vm1181 = vcmp.lt.s32.totalorder %v1166, %v1172
      %vm1182 = vcmp.lt.s32.totalorder %v1167, %v1172
      %vm1183 = vcmp.lt.s32.totalorder %v1168, %v1172
      %vm1184 = vcmp.lt.s32.totalorder %v1169, %v1172
      %vm1185 = vcmp.lt.s32.totalorder %v1170, %v1172
      %vm1186 = vcmp.lt.s32.totalorder %v1171, %v1172
      %v1187 = vsel %vm1173, %v1073, 0.0
      %v1188 = vsel %vm1174, %v1078, 0.0
      %v1189 = vsel %vm1175, %v1083, 0.0
      %v1190 = vsel %vm1176, %v1088, 0.0
      %v1191 = vsel %vm1177, %v1093, 0.0
      %v1192 = vsel %vm1178, %v1098, 0.0
      %v1193 = vsel %vm1179, %v1103, 0.0
      %v1194 = vsel %vm1180, %v1108, 0.0
      %v1195 = vsel %vm1181, %v1113, 0.0
      %v1196 = vsel %vm1182, %v1118, 0.0
      %v1197 = vsel %vm1183, %v1123, 0.0
      %v1198 = vsel %vm1184, %v1128, 0.0
      %v1199 = vsel %vm1185, %v1133, 0.0
      %v1200 = vsel %vm1186, %v1138, 0.0
      %v1201 = vadd.f32 %v1187, %v1188
      %v1202 = vadd.f32 %v1201, %v1189
      %v1203 = vadd.f32 %v1202, %v1190
      %v1204 = vadd.f32 %v1203, %v1191
      %v1205 = vadd.f32 %v1204, %v1192
      %v1206 = vadd.f32 %v1205, %v1193
      %v1207 = vadd.f32 %v1206, %v1194
      %v1208 = vadd.f32 %v1207, %v1195
      %v1209 = vadd.f32 %v1208, %v1196
      %v1210 = vadd.f32 %v1209, %v1197
      %v1211 = vadd.f32 %v1210, %v1198
      %v1212 = vadd.f32 %v1211, %v1199
      %v1213 = vadd.f32 %v1212, %v1200
      %v1214 = vrot.slane %v1213, 4
      %v1215 = vadd.f32 %v1213, %v1214
      %v1216 = vrot.slane %v1215, 2
      %v1217 = vadd.f32 %v1215, %v1216
      %v1218 = vrot.slane %v1217, 1
      %v1219 = vadd.f32 %v1217, %v1218
      %1220 = vst [vmem:[%s243] sm:$0x1] %v1219
      %v1221 = vmul.f32 %v1187, %v1187
      %v1222 = vmul.f32 %v1188, %v1188
      %v1223 = vmul.f32 %v1189, %v1189
      %v1224 = vmul.f32 %v1190, %v1190
      %v1225 = vmul.f32 %v1191, %v1191
      %v1226 = vmul.f32 %v1192, %v1192
      %v1227 = vmul.f32 %v1193, %v1193
      %v1228 = vmul.f32 %v1194, %v1194
      %v1229 = vmul.f32 %v1195, %v1195
      %v1230 = vmul.f32 %v1196, %v1196
      %v1231 = vmul.f32 %v1197, %v1197
      %v1232 = vmul.f32 %v1198, %v1198
      %v1233 = vmul.f32 %v1199, %v1199
      %v1234 = vmul.f32 %v1200, %v1200
      %v1235 = vadd.f32 %v1221, %v1222
      %v1236 = vadd.f32 %v1235, %v1223
      %v1237 = vadd.f32 %v1236, %v1224
      %v1238 = vadd.f32 %v1237, %v1225
      %v1239 = vadd.f32 %v1238, %v1226
      %v1240 = vadd.f32 %v1239, %v1227
      %v1241 = vadd.f32 %v1240, %v1228
      %v1242 = vadd.f32 %v1241, %v1229
      %v1243 = vadd.f32 %v1242, %v1230
      %v1244 = vadd.f32 %v1243, %v1231
      %v1245 = vadd.f32 %v1244, %v1232
      %v1246 = vadd.f32 %v1245, %v1233
      %v1247 = vadd.f32 %v1246, %v1234
      %v1248 = vrot.slane %v1247, 4
      %v1249 = vadd.f32 %v1247, %v1248
      %v1250 = vrot.slane %v1249, 2
      %v1251 = vadd.f32 %v1249, %v1250
      %v1252 = vrot.slane %v1251, 1
      %v1253 = vadd.f32 %v1251, %v1252
      %1254 = vst [vmem:[%s243 + $0x1] sm:$0x1] %v1253
      %s1255 = smul.u32 7, %s21
      %p1256 = scmp.lt.s32.totalorder %s20, 1
      %s1257 = scalar_select %p1256, %s20, 1
      %p1258 = scmp.lt.s32.totalorder %s1255, 20
      %s1259 = scalar_select %p1258, %s1255, 20
      %s1260 = smul.addr %s1259, 2
      %s1261 = smul.addr %s1257, 42
      %s1262 = sadd.s32 %s1260, %s1261
      %s1263 = smul.addr %s1262, 8
      %s1264 = scalar_lea.vmem %s3, %s1263
      %p1265 = scmp.lt.s32.totalorder %s20, 1
      %s1266 = scalar_select %p1265, %s20, 1
      %p1267 = scmp.lt.s32.totalorder %s21, 2
      %s1268 = scalar_select %p1267, %s21, 2
      %s1269 = smul.addr %s1266, 3
      %s1270 = sadd.s32 %s1268, %s1269
      %s1271 = smul.addr %s1270, 2
      %s1272 = scalar_lea.vmem %s4, %s1271
      // Predicated region
      $region33: #{conv_batch_norm.2} parent=31 // pred_check
        %p1273 = pneg %p116
      $region34: #{conv_batch_norm.2} parent=31 // pred_check_branch
        %1275 = sbr.rel (%p1273) target = $region36
      $region35: #{conv_batch_norm.2} parent=31 // pred_region
        %s1276 = smul.u32 7, %s21
      $region36: #{conv_batch_norm.2} parent=31 // pred_fallthru
        _
      // Predicated region
      $region37: #{conv_batch_norm.2} parent=31 // pred_check
        %p1277 = pneg %p144
      $region38: #{conv_batch_norm.2} parent=31 // pred_check_branch
        %1279 = sbr.rel (%p1277) target = $region40
      $region39: #{conv_batch_norm.2} parent=31 // pred_region
        _
      $region40: #{conv_batch_norm.2} parent=31 // pred_fallthru
        _
    $region32: #{conv_batch_norm.2} parent=5 // pred_fallthru
      _
    %p1280 = scmp.le.s32.totalorder 2, %s11
    // Predicated region
    $region41: #{conv_batch_norm.2} parent=5 // pred_check
      %p1281 = pneg %p1280
    $region42: #{conv_batch_norm.2} parent=5 // pred_check_branch
      %1283 = sbr.rel (%p1281) target = $region44
    $region43: #{conv_batch_norm.2} parent=5 // pred_region
      %s1284 = ssub.s32 %s11, 2
      // Predicated region
      $region45: #{conv_batch_norm.2} parent=43 // pred_check
        %p1285 = pneg %p122
      $region46: #{conv_batch_norm.2} parent=43 // pred_check_branch
        %1287 = sbr.rel (%p1285) target = $region48
      $region47: #{conv_batch_norm.2} parent=43 // pred_region
        %s1288 = smul.u32 7, %s23
        %p1289 = scmp.lt.s32.totalorder %s22, 1
        %s1290 = scalar_select %p1289, %s22, 1
        %p1291 = scmp.lt.s32.totalorder %s1288, 20
        %s1292 = scalar_select %p1291, %s1288, 20
        %s1293 = smul.addr %s1292, 2
        %s1294 = smul.addr %s1290, 42
        %s1295 = sadd.s32 %s1293, %s1294
        %s1296 = smul.addr %s1295, 8
        %s1297 = scalar_lea.vmem %s3, %s1296
      $region48: #{conv_batch_norm.2} parent=43 // pred_fallthru
        _
      // Predicated region
      $region49: #{conv_batch_norm.2} parent=43 // pred_check
        %p1298 = pneg %p150
      $region50: #{conv_batch_norm.2} parent=43 // pred_check_branch
        %1300 = sbr.rel (%p1298) target = $region52
      $region51: #{conv_batch_norm.2} parent=43 // pred_region
        %p1301 = scmp.lt.s32.totalorder %s22, 1
        %s1302 = scalar_select %p1301, %s22, 1
        %p1303 = scmp.lt.s32.totalorder %s23, 2
        %s1304 = scalar_select %p1303, %s23, 2
        %s1305 = smul.addr %s1302, 3
        %s1306 = sadd.s32 %s1304, %s1305
        %s1307 = smul.addr %s1306, 2
        %s1308 = scalar_lea.vmem %s4, %s1307
      $region52: #{conv_batch_norm.2} parent=43 // pred_fallthru
        _
    $region44: #{conv_batch_norm.2} parent=5 // pred_fallthru
      _
  $region6: #{conv_batch_norm.2} parent=0 // loop_footer
    %s15 = sadd.s32 1, %s11
  $region7: #{conv_batch_norm.2} parent=0 // loop_footer_branch
    %10 = sbr.rel target = $region3
  $region8: #{conv_batch_norm.2} parent=0 // loop_exit
    _

</llo_original>
